<compile_context>
chip_gen: v5e
topology: v5e:2x2
jax: 0.10.0
libtpu: 0.0.40
codegen_flags: <defaults>
</compile_context>

<pallas_src>
import jax
import jax.numpy as jnp
from jax.experimental import pallas as pl
from jax.experimental.pallas import tpu as pltpu


def mlp_kernel(x_ref, w1_ref, b1_ref, w2_ref, b2_ref, o_ref):
    # Layer 1: (TB, Kp) bf16 @ (Kp, 256) bf16 -> f32 accumulate on the MXU.
    h = jnp.dot(x_ref[...], w1_ref[...], preferred_element_type=jnp.float32)
    # f32 epilogue (bias + ReLU) on the VPU.
    h = jnp.maximum(h + b1_ref[...], 0.0)
    # Layer 2: cast the activation to bf16 for the MXU, accumulate in f32.
    out = jnp.dot(h.astype(jnp.bfloat16), w2_ref[...],
                  preferred_element_type=jnp.float32)
    o_ref[...] = (out + b2_ref[...]).astype(o_ref.dtype)


def mlp_forward(x, w1, b1, w2, b2, *, tb=128):
    """x: (B, 784) f32; w1: (784, 256); b1: (256,); w2: (256, 10); b2: (10,)."""
    B, K = x.shape
    H = w1.shape[1]      # 256
    N = w2.shape[1]      # 10

    # Pad contraction dim 784 -> 896 (7*128), output dim 10 -> 128,
    # and batch up to a multiple of the batch tile.
    K_pad = pl.cdiv(K, 128) * 128
    N_pad = max(pl.cdiv(N, 128) * 128, 128)
    B_pad = pl.cdiv(B, tb) * tb

    x_p = jnp.zeros((B_pad, K_pad), jnp.bfloat16).at[:B, :K].set(
        x.astype(jnp.bfloat16))
    w1_p = jnp.zeros((K_pad, H), jnp.bfloat16).at[:K, :].set(
        w1.astype(jnp.bfloat16))
    b1_p = b1.astype(jnp.float32).reshape(1, H)
    w2_p = jnp.zeros((H, N_pad), jnp.bfloat16).at[:, :N].set(
        w2.astype(jnp.bfloat16))
    b2_p = jnp.zeros((1, N_pad), jnp.float32).at[:, :N].set(
        b2.astype(jnp.float32).reshape(1, N))

    grid = (B_pad // tb,)

    out_padded = pl.pallas_call(
        mlp_kernel,
        out_shape=jax.ShapeDtypeStruct((B_pad, N_pad), jnp.float32),
        grid_spec=pltpu.PrefetchScalarGridSpec(
            num_scalar_prefetch=0,
            grid=grid,
            in_specs=[
                # x: batch-tiled, double-buffered by the Pallas pipeline.
                pl.BlockSpec((tb, K_pad), lambda i: (i, 0)),
                # Weights / biases: constant block index -> resident in VMEM,
                # no re-DMA across batch tiles.
                pl.BlockSpec((K_pad, H), lambda i: (0, 0)),
                pl.BlockSpec((1, H), lambda i: (0, 0)),
                pl.BlockSpec((H, N_pad), lambda i: (0, 0)),
                pl.BlockSpec((1, N_pad), lambda i: (0, 0)),
            ],
            out_specs=pl.BlockSpec((tb, N_pad), lambda i: (i, 0)),
        ),
        compiler_params=pltpu.CompilerParams(
            dimension_semantics=("parallel",),
        ),
    )(x_p, w1_p, b1_p, w2_p, b2_p)

    # Strip batch and output-feature padding.
    return out_padded[:B, :N]


def init_params(key):
    """Deterministic init mimicking PyTorch nn.Linear default (uniform +/- 1/sqrt(fan_in))."""
    k1, k2, k3, k4 = jax.random.split(key, 4)
    bound1 = 1.0 / jnp.sqrt(784.0)
    bound2 = 1.0 / jnp.sqrt(256.0)
    # Stored already transposed: (in, out).
    w1 = jax.random.uniform(k1, (784, 256), jnp.float32, -bound1, bound1)
    b1 = jax.random.uniform(k2, (256,), jnp.float32, -bound1, bound1)
    w2 = jax.random.uniform(k3, (256, 10), jnp.float32, -bound2, bound2)
    b2 = jax.random.uniform(k4, (10,), jnp.float32, -bound2, bound2)
    return w1, b1, w2, b2


if __name__ == "__main__":
    key = jax.random.PRNGKey(0)
    k_x, k_p = jax.random.split(key)

    B = 8  # small example batch (padded to the 128-row tile inside the wrapper)
    x = jax.random.normal(k_x, (B, 784), jnp.float32)
    w1, b1, w2, b2 = init_params(k_p)

    out = mlp_forward(x, w1, b1, w2, b2)
    out = jax.block_until_ready(out)

    # Pure-JAX f32 reference (same math; kernel uses bf16 MXU inputs with f32
    # accumulation, so compare with a bf16-appropriate tolerance).
    ref = jnp.maximum(x @ w1 + b1[None, :], 0.0) @ w2 + b2[None, :]
    assert out.shape == (B, 10)
    assert jnp.allclose(out, ref, atol=3e-2, rtol=3e-2), (
        float(jnp.max(jnp.abs(out - ref))))

    print("KERNEL_OK")
</pallas_src>

<mosaic_0001>
module attributes {stable_mosaic.version = 11 : i64} {
  func.func @mlp_kernel(%arg0: i32, %arg1: memref<128x896xbf16, #tpu.memory_space<vmem>>, %arg2: memref<896x256xbf16, #tpu.memory_space<vmem>>, %arg3: memref<1x256xf32, #tpu.memory_space<vmem>>, %arg4: memref<256x128xbf16, #tpu.memory_space<vmem>>, %arg5: memref<1x128xf32, #tpu.memory_space<vmem>>, %arg6: memref<128x128xf32, #tpu.memory_space<vmem>>) attributes {dimension_semantics = [#tpu.dimension_semantics<parallel>], iteration_bounds = array<i64: 1>, scalar_prefetch = 0 : i64, scratch_operands = 0 : i64, tpu.core_type = #tpu.core_type<tc>, window_params = [{transform_indices = @transform_0, window_bounds = array<i64: 128, 896>}, {pipeline_mode = #tpu.pipeline_mode<synchronous>, transform_indices = @transform_1, window_bounds = array<i64: 896, 256>}, {pipeline_mode = #tpu.pipeline_mode<synchronous>, transform_indices = @transform_2, window_bounds = array<i64: 1, 256>}, {pipeline_mode = #tpu.pipeline_mode<synchronous>, transform_indices = @transform_3, window_bounds = array<i64: 256, 128>}, {pipeline_mode = #tpu.pipeline_mode<synchronous>, transform_indices = @transform_4, window_bounds = array<i64: 1, 128>}, {transform_indices = @transform_5, window_bounds = array<i64: 128, 128>}]} {
    %c0 = arith.constant 0 : index
    %c0_0 = arith.constant 0 : index
    %0 = vector.load %arg1[%c0, %c0_0] : memref<128x896xbf16, #tpu.memory_space<vmem>>, vector<128x896xbf16>
    %c0_1 = arith.constant 0 : index
    %c0_2 = arith.constant 0 : index
    %1 = vector.load %arg2[%c0_1, %c0_2] : memref<896x256xbf16, #tpu.memory_space<vmem>>, vector<896x256xbf16>
    %cst = arith.constant dense<0.000000e+00> : vector<128x256xf32>
    %2 = tpu.matmul %0, %1, %cst {dimension_numbers = #tpu.dot_dimension_numbers<[1], [0], [0], [1], [0, 0, 1, 1], [], []>} : vector<128x896xbf16>, vector<896x256xbf16>, vector<128x256xf32> -> vector<128x256xf32>
    %c0_3 = arith.constant 0 : index
    %c0_4 = arith.constant 0 : index
    %3 = vector.load %arg3[%c0_3, %c0_4] : memref<1x256xf32, #tpu.memory_space<vmem>>, vector<1x256xf32>
    %4 = vector.broadcast %3 : vector<1x256xf32> to vector<128x256xf32>
    %5 = arith.addf %2, %4 : vector<128x256xf32>
    %cst_5 = arith.constant 0.000000e+00 : f32
    %6 = vector.broadcast %cst_5 : f32 to vector<128x256xf32>
    %7 = arith.maximumf %5, %6 : vector<128x256xf32>
    %8 = arith.truncf %7 : vector<128x256xf32> to vector<128x256xbf16>
    %c0_6 = arith.constant 0 : index
    %c0_7 = arith.constant 0 : index
    %9 = vector.load %arg4[%c0_6, %c0_7] : memref<256x128xbf16, #tpu.memory_space<vmem>>, vector<256x128xbf16>
    %cst_8 = arith.constant dense<0.000000e+00> : vector<128x128xf32>
    %10 = tpu.matmul %8, %9, %cst_8 {dimension_numbers = #tpu.dot_dimension_numbers<[1], [0], [0], [1], [0, 0, 1, 1], [], []>} : vector<128x256xbf16>, vector<256x128xbf16>, vector<128x128xf32> -> vector<128x128xf32>
    %c0_9 = arith.constant 0 : index
    %c0_10 = arith.constant 0 : index
    %11 = vector.load %arg5[%c0_9, %c0_10] : memref<1x128xf32, #tpu.memory_space<vmem>>, vector<1x128xf32>
    %12 = vector.broadcast %11 : vector<1x128xf32> to vector<128x128xf32>
    %13 = arith.addf %10, %12 : vector<128x128xf32>
    %c0_11 = arith.constant 0 : index
    %c0_12 = arith.constant 0 : index
    %14 = vector.load %arg6[%c0_11, %c0_12] : memref<128x128xf32, #tpu.memory_space<vmem>>, vector<128x128xf32>
    tpu.vector_store %arg6[%c0_11, %c0_12], %13 {strides = array<i32>} : memref<128x128xf32, #tpu.memory_space<vmem>>, vector<128x128xf32>,
    return
  }
  func.func @transform_0(%arg0: i32) -> (i32, i32) {
    %c0_i32 = arith.constant 0 : i32
    %c0_i32_0 = arith.constant 0 : i32
    return %arg0, %c0_i32 : i32, i32
  }
  func.func @transform_1(%arg0: i32) -> (i32, i32) {
    %c0_i32 = arith.constant 0 : i32
    %c0_i32_0 = arith.constant 0 : i32
    %c0_i32_1 = arith.constant 0 : i32
    return %c0_i32, %c0_i32_0 : i32, i32
  }
  func.func @transform_2(%arg0: i32) -> (i32, i32) {
    %c0_i32 = arith.constant 0 : i32
    %c0_i32_0 = arith.constant 0 : i32
    %c0_i32_1 = arith.constant 0 : i32
    return %c0_i32, %c0_i32_0 : i32, i32
  }
  func.func @transform_3(%arg0: i32) -> (i32, i32) {
    %c0_i32 = arith.constant 0 : i32
    %c0_i32_0 = arith.constant 0 : i32
    %c0_i32_1 = arith.constant 0 : i32
    return %c0_i32, %c0_i32_0 : i32, i32
  }
  func.func @transform_4(%arg0: i32) -> (i32, i32) {
    %c0_i32 = arith.constant 0 : i32
    %c0_i32_0 = arith.constant 0 : i32
    %c0_i32_1 = arith.constant 0 : i32
    return %c0_i32, %c0_i32_0 : i32, i32
  }
  func.func @transform_5(%arg0: i32) -> (i32, i32) {
    %c0_i32 = arith.constant 0 : i32
    %c0_i32_0 = arith.constant 0 : i32
    return %arg0, %c0_i32 : i32, i32
  }
}

</mosaic_0001>

<llo_original>
// kernel: tpu_custom_call.1
$region0: #{tpu_custom_call.1}
  #allocation0 [shape = 'u32[]', space=smem, size = 0x4, offset = 0x4, fixed_abs, tag = 'smem constant byte address 0x4 - core index']
  #allocation1 [shape = 'u32[72,128]{1,0:T(1,128)}', space=vmem, size = 0x9000, scoped, tag = 'internal scratch']
  %s0 = inlined_call_operand.hbm [shape: bf16[128,896], index: 0, kind: input, shape index: {}]
  %s1 = inlined_call_operand.hbm [shape: bf16[896,256], index: 1, kind: input, shape index: {}]
  %s2 = inlined_call_operand.hbm [shape: f32[1,256], index: 2, kind: input, shape index: {}]
  %s3 = inlined_call_operand.hbm [shape: bf16[256,128], index: 3, kind: input, shape index: {}]
  %s4 = inlined_call_operand.vmem [shape: f32[1,128], index: 4, kind: input, shape index: {}]
  %s5 = inlined_call_operand.hbm [shape: f32[128,128], index: 5, kind: output, shape index: {}]
  %s6 = sld [smem:[#allocation0]]
  $region46: #{tpu_custom_call.1} parent=0
    _
  %s8 = ssub.s32 1, %s6
  %s9 = scalar_select 0, %s8, %s6
  $region1: #{tpu_custom_call.1} parent=0
    #allocation2 [shape = 'u8[229376]{0}', space=vmem, size = 0x38000, scoped, tag = 'input window, operand 0, single buffered']
    #allocation3 [shape = 's32[1]{0}', space=sflag, size = 0x4, scoped, tag = 'scoped memory for tpu_custom_call.1']
    #allocation4 [shape = 's32[1]{0}', space=sflag, size = 0x4, scoped, tag = 'scoped memory for tpu_custom_call.1']
    #allocation5 [shape = 'u8[458752]{0}', space=vmem, size = 0x70000, scoped, tag = 'input window, operand 1, single buffered']
    #allocation6 [shape = 's32[1]{0}', space=sflag, size = 0x4, scoped, tag = 'scoped memory for tpu_custom_call.1']
    #allocation7 [shape = 'u8[1024]{0}', space=vmem, size = 0x400, scoped, tag = 'input window, operand 2, single buffered']
    #allocation8 [shape = 'u8[65536]{0}', space=vmem, size = 0x10000, scoped, tag = 'input window, operand 3, single buffered']
    #allocation9 [shape = 's32[1]{0}', space=sflag, size = 0x4, scoped, tag = 'scoped memory for tpu_custom_call.1']
    #allocation10 [shape = 'u8[65536]{0}', space=vmem, size = 0x10000, scoped, tag = 'output window, operand 0, single buffered']
    %10 = vsyncpa [#allocation3], 0
    %11 = vsyncpa [#allocation6], 0
    %12 = vsyncpa [#allocation9], 0
    %13 = vsyncpa [#allocation4], 0
    // Predicated region
    $region2: #{tpu_custom_call.1} parent=1 // pred_check
      _
    $region3: #{tpu_custom_call.1} parent=1 // pred_check_branch
      %15 = sbr.rel (0) target = $region5
    $region4: #{tpu_custom_call.1} parent=1 // pred_region
      %17 = vsyncadd [#allocation3], 0
      %s18 = sshll.u32 %s0, 4
      %s19 = int_to_ptr.hbm [resolvable:$true] %s18
      %s20 = sshll.u32 [#allocation2], 4
      %s21 = int_to_ptr.vmem [resolvable:$true] %s20
      %26 = dma.hbm_to_vmem [thread:$0]  %s19, 7168, %s21, [#allocation3], 448, 448, 28
    $region5: #{tpu_custom_call.1} parent=1 // pred_fallthru
      _
    // Predicated region
    $region6: #{tpu_custom_call.1} parent=1 // pred_check
      _
    $region7: #{tpu_custom_call.1} parent=1 // pred_check_branch
      %28 = sbr.rel (0) target = $region9
    $region8: #{tpu_custom_call.1} parent=1 // pred_region
      %30 = vsyncadd [#allocation6], 0
      %s31 = sshll.u32 %s1, 4
      %s32 = int_to_ptr.hbm [resolvable:$true] %s31
      %s33 = sshll.u32 [#allocation5], 4
      %s34 = int_to_ptr.vmem [resolvable:$true] %s33
      %39 = dma.hbm_to_vmem [thread:$0]  %s32, 14336, %s34, [#allocation6], 128, 128, 8
    $region9: #{tpu_custom_call.1} parent=1 // pred_fallthru
      _
    // Predicated region
    $region10: #{tpu_custom_call.1} parent=1 // pred_check
      _
    $region11: #{tpu_custom_call.1} parent=1 // pred_check_branch
      %41 = sbr.rel (0) target = $region13
    $region12: #{tpu_custom_call.1} parent=1 // pred_region
      %43 = vsyncadd [#allocation6], 0
      %s45 = sshll.u32 %s2, 4
      %s46 = int_to_ptr.hbm [resolvable:$true] %s45
      %s47 = sshll.u32 [#allocation7], 4
      %s48 = int_to_ptr.vmem [resolvable:$true] %s47
      %50 = dma.hbm_to_vmem [thread:$0]  %s46, 32, %s48, [#allocation6]
    $region13: #{tpu_custom_call.1} parent=1 // pred_fallthru
      _
    // Predicated region
    $region14: #{tpu_custom_call.1} parent=1 // pred_check
      _
    $region15: #{tpu_custom_call.1} parent=1 // pred_check_branch
      %52 = sbr.rel (0) target = $region17
    $region16: #{tpu_custom_call.1} parent=1 // pred_region
      %54 = vsyncadd [#allocation9], 0
      %s55 = sshll.u32 %s3, 4
      %s56 = int_to_ptr.hbm [resolvable:$true] %s55
      %s57 = sshll.u32 [#allocation8], 4
      %s58 = int_to_ptr.vmem [resolvable:$true] %s57
      %63 = dma.hbm_to_vmem [thread:$0]  %s56, 2048, %s58, [#allocation9], 64, 64, 4
    $region17: #{tpu_custom_call.1} parent=1 // pred_fallthru
      _
    // Predicated region
    $region18: #{tpu_custom_call.1} parent=1 // pred_check
      _
    $region19: #{tpu_custom_call.1} parent=1 // pred_check_branch
      %65 = sbr.rel (0) target = $region21
    $region20: #{tpu_custom_call.1} parent=1 // pred_region
      _
    $region21: #{tpu_custom_call.1} parent=1 // pred_fallthru
      _
    // Predicated region
    $region22: #{tpu_custom_call.1} parent=1 // pred_check
      _
    $region23: #{tpu_custom_call.1} parent=1 // pred_check_branch
      %67 = sbr.rel (0) target = $region25
    $region24: #{tpu_custom_call.1} parent=1 // pred_region
      %69 = dma.done [#allocation3], 7168
    $region25: #{tpu_custom_call.1} parent=1 // pred_fallthru
      _
    // Predicated region
    $region26: #{tpu_custom_call.1} parent=1 // pred_check
      _
    $region27: #{tpu_custom_call.1} parent=1 // pred_check_branch
      %71 = sbr.rel (0) target = $region29
    $region28: #{tpu_custom_call.1} parent=1 // pred_region
      %73 = dma.done [#allocation6], 14336
    $region29: #{tpu_custom_call.1} parent=1 // pred_fallthru
      _
    // Predicated region
    $region30: #{tpu_custom_call.1} parent=1 // pred_check
      _
    $region31: #{tpu_custom_call.1} parent=1 // pred_check_branch
      %75 = sbr.rel (0) target = $region33
    $region32: #{tpu_custom_call.1} parent=1 // pred_region
      %77 = dma.done [#allocation6], 32
    $region33: #{tpu_custom_call.1} parent=1 // pred_fallthru
      _
    // Predicated region
    $region34: #{tpu_custom_call.1} parent=1 // pred_check
      _
    $region35: #{tpu_custom_call.1} parent=1 // pred_check_branch
      %79 = sbr.rel (0) target = $region37
    $region36: #{tpu_custom_call.1} parent=1 // pred_region
      %81 = dma.done [#allocation9], 2048
    $region37: #{tpu_custom_call.1} parent=1 // pred_fallthru
      _
    %v82 = vld [vmem:[#allocation2] sm:$0xff]
    %v83 = vld [vmem:[#allocation2 + $0x8] sm:$0xff]
    %v84 = vld [vmem:[#allocation2 + $0x10] sm:$0xff]
    %v85 = vld [vmem:[#allocation2 + $0x18] sm:$0xf]
    %v86 = vld [vmem:[#allocation2 + $0x1c] sm:$0xff]
    %v87 = vld [vmem:[#allocation2 + $0x24] sm:$0xff]
    %v88 = vld [vmem:[#allocation2 + $0x2c] sm:$0xff]
    %v89 = vld [vmem:[#allocation2 + $0x34] sm:$0xf]
    %v90 = vld [vmem:[#allocation2 + $0x38] sm:$0xff]
    %v91 = vld [vmem:[#allocation2 + $0x40] sm:$0xff]
    %v92 = vld [vmem:[#allocation2 + $0x48] sm:$0xff]
    %v93 = vld [vmem:[#allocation2 + $0x50] sm:$0xf]
    %v94 = vld [vmem:[#allocation2 + $0x54] sm:$0xff]
    %v95 = vld [vmem:[#allocation2 + $0x5c] sm:$0xff]
    %v96 = vld [vmem:[#allocation2 + $0x64] sm:$0xff]
    %v97 = vld [vmem:[#allocation2 + $0x6c] sm:$0xf]
    %v98 = vld [vmem:[#allocation2 + $0x70] sm:$0xff]
    %v99 = vld [vmem:[#allocation2 + $0x78] sm:$0xff]
    %v100 = vld [vmem:[#allocation2 + $0x80] sm:$0xff]
    %v101 = vld [vmem:[#allocation2 + $0x88] sm:$0xf]
    %v102 = vld [vmem:[#allocation2 + $0x8c] sm:$0xff]
    %v103 = vld [vmem:[#allocation2 + $0x94] sm:$0xff]
    %v104 = vld [vmem:[#allocation2 + $0x9c] sm:$0xff]
    %v105 = vld [vmem:[#allocation2 + $0xa4] sm:$0xf]
    %v106 = vld [vmem:[#allocation2 + $0xa8] sm:$0xff]
    %v107 = vld [vmem:[#allocation2 + $0xb0] sm:$0xff]
    %v108 = vld [vmem:[#allocation2 + $0xb8] sm:$0xff]
    %v109 = vld [vmem:[#allocation2 + $0xc0] sm:$0xf]
    %v110 = vld [vmem:[#allocation2 + $0xc4] sm:$0xff]
    %v111 = vld [vmem:[#allocation2 + $0xcc] sm:$0xff]
    %v112 = vld [vmem:[#allocation2 + $0xd4] sm:$0xff]
    %v113 = vld [vmem:[#allocation2 + $0xdc] sm:$0xf]
    %v114 = vld [vmem:[#allocation2 + $0xe0] sm:$0xff]
    %v115 = vld [vmem:[#allocation2 + $0xe8] sm:$0xff]
    %v116 = vld [vmem:[#allocation2 + $0xf0] sm:$0xff]
    %v117 = vld [vmem:[#allocation2 + $0xf8] sm:$0xf]
    %v118 = vld [vmem:[#allocation2 + $0xfc] sm:$0xff]
    %v119 = vld [vmem:[#allocation2 + $0x104] sm:$0xff]
    %v120 = vld [vmem:[#allocation2 + $0x10c] sm:$0xff]
    %v121 = vld [vmem:[#allocation2 + $0x114] sm:$0xf]
    %v122 = vld [vmem:[#allocation2 + $0x118] sm:$0xff]
    %v123 = vld [vmem:[#allocation2 + $0x120] sm:$0xff]
    %v124 = vld [vmem:[#allocation2 + $0x128] sm:$0xff]
    %v125 = vld [vmem:[#allocation2 + $0x130] sm:$0xf]
    %v126 = vld [vmem:[#allocation2 + $0x134] sm:$0xff]
    %v127 = vld [vmem:[#allocation2 + $0x13c] sm:$0xff]
    %v128 = vld [vmem:[#allocation2 + $0x144] sm:$0xff]
    %v129 = vld [vmem:[#allocation2 + $0x14c] sm:$0xf]
    %v130 = vld [vmem:[#allocation2 + $0x150] sm:$0xff]
    %v131 = vld [vmem:[#allocation2 + $0x158] sm:$0xff]
    %v132 = vld [vmem:[#allocation2 + $0x160] sm:$0xff]
    %v133 = vld [vmem:[#allocation2 + $0x168] sm:$0xf]
    %v134 = vld [vmem:[#allocation2 + $0x16c] sm:$0xff]
    %v135 = vld [vmem:[#allocation2 + $0x174] sm:$0xff]
    %v136 = vld [vmem:[#allocation2 + $0x17c] sm:$0xff]
    %v137 = vld [vmem:[#allocation2 + $0x184] sm:$0xf]
    %v138 = vld [vmem:[#allocation2 + $0x188] sm:$0xff]
    %v139 = vld [vmem:[#allocation2 + $0x190] sm:$0xff]
    %v140 = vld [vmem:[#allocation2 + $0x198] sm:$0xff]
    %v141 = vld [vmem:[#allocation2 + $0x1a0] sm:$0xf]
    %v142 = vld [vmem:[#allocation2 + $0x1a4] sm:$0xff]
    %v143 = vld [vmem:[#allocation2 + $0x1ac] sm:$0xff]
    %v144 = vld [vmem:[#allocation2 + $0x1b4] sm:$0xff]
    %v145 = vld [vmem:[#allocation2 + $0x1bc] sm:$0xf]
    %v146 = vld [vmem:[#allocation5] sm:$0xff]
    %v147 = vld [vmem:[#allocation5 + $0x8] sm:$0xff]
    %v148 = vld [vmem:[#allocation5 + $0x10] sm:$0xff]
    %v149 = vld [vmem:[#allocation5 + $0x18] sm:$0xff]
    %v150 = vld [vmem:[#allocation5 + $0x20] sm:$0xff]
    %v151 = vld [vmem:[#allocation5 + $0x28] sm:$0xff]
    %v152 = vld [vmem:[#allocation5 + $0x30] sm:$0xff]
    %v153 = vld [vmem:[#allocation5 + $0x38] sm:$0xff]
    %v154 = vld [vmem:[#allocation5 + $0x40] sm:$0xff]
    %v155 = vld [vmem:[#allocation5 + $0x48] sm:$0xff]
    %v156 = vld [vmem:[#allocation5 + $0x50] sm:$0xff]
    %v157 = vld [vmem:[#allocation5 + $0x58] sm:$0xff]
    %v158 = vld [vmem:[#allocation5 + $0x60] sm:$0xff]
    %v159 = vld [vmem:[#allocation5 + $0x68] sm:$0xff]
    %v160 = vld [vmem:[#allocation5 + $0x70] sm:$0xff]
    %v161 = vld [vmem:[#allocation5 + $0x78] sm:$0xff]
    %v162 = vld [vmem:[#allocation5 + $0x80] sm:$0xff]
    %v163 = vld [vmem:[#allocation5 + $0x88] sm:$0xff]
    %v164 = vld [vmem:[#allocation5 + $0x90] sm:$0xff]
    %v165 = vld [vmem:[#allocation5 + $0x98] sm:$0xff]
    %v166 = vld [vmem:[#allocation5 + $0xa0] sm:$0xff]
    %v167 = vld [vmem:[#allocation5 + $0xa8] sm:$0xff]
    %v168 = vld [vmem:[#allocation5 + $0xb0] sm:$0xff]
    %v169 = vld [vmem:[#allocation5 + $0xb8] sm:$0xff]
    %v170 = vld [vmem:[#allocation5 + $0xc0] sm:$0xff]
    %v171 = vld [vmem:[#allocation5 + $0xc8] sm:$0xff]
    %v172 = vld [vmem:[#allocation5 + $0xd0] sm:$0xff]
    %v173 = vld [vmem:[#allocation5 + $0xd8] sm:$0xff]
    %v174 = vld [vmem:[#allocation5 + $0xe0] sm:$0xff]
    %v175 = vld [vmem:[#allocation5 + $0xe8] sm:$0xff]
    %v176 = vld [vmem:[#allocation5 + $0xf0] sm:$0xff]
    %v177 = vld [vmem:[#allocation5 + $0xf8] sm:$0xff]
    %v178 = vld [vmem:[#allocation5 + $0x100] sm:$0xff]
    %v179 = vld [vmem:[#allocation5 + $0x108] sm:$0xff]
    %v180 = vld [vmem:[#allocation5 + $0x110] sm:$0xff]
    %v181 = vld [vmem:[#allocation5 + $0x118] sm:$0xff]
    %v182 = vld [vmem:[#allocation5 + $0x120] sm:$0xff]
    %v183 = vld [vmem:[#allocation5 + $0x128] sm:$0xff]
    %v184 = vld [vmem:[#allocation5 + $0x130] sm:$0xff]
    %v185 = vld [vmem:[#allocation5 + $0x138] sm:$0xff]
    %v186 = vld [vmem:[#allocation5 + $0x140] sm:$0xff]
    %v187 = vld [vmem:[#allocation5 + $0x148] sm:$0xff]
    %v188 = vld [vmem:[#allocation5 + $0x150] sm:$0xff]
    %v189 = vld [vmem:[#allocation5 + $0x158] sm:$0xff]
    %v190 = vld [vmem:[#allocation5 + $0x160] sm:$0xff]
    %v191 = vld [vmem:[#allocation5 + $0x168] sm:$0xff]
    %v192 = vld [vmem:[#allocation5 + $0x170] sm:$0xff]
    %v193 = vld [vmem:[#allocation5 + $0x178] sm:$0xff]
    %v194 = vld [vmem:[#allocation5 + $0x180] sm:$0xff]
    %v195 = vld [vmem:[#allocation5 + $0x188] sm:$0xff]
    %v196 = vld [vmem:[#allocation5 + $0x190] sm:$0xff]
    %v197 = vld [vmem:[#allocation5 + $0x198] sm:$0xff]
    %v198 = vld [vmem:[#allocation5 + $0x1a0] sm:$0xff]
    %v199 = vld [vmem:[#allocation5 + $0x1a8] sm:$0xff]
    %v200 = vld [vmem:[#allocation5 + $0x1b0] sm:$0xff]
    %v201 = vld [vmem:[#allocation5 + $0x1b8] sm:$0xff]
    %v202 = vld [vmem:[#allocation5 + $0x1c0] sm:$0xff]
    %v203 = vld [vmem:[#allocation5 + $0x1c8] sm:$0xff]
    %v204 = vld [vmem:[#allocation5 + $0x1d0] sm:$0xff]
    %v205 = vld [vmem:[#allocation5 + $0x1d8] sm:$0xff]
    %v206 = vld [vmem:[#allocation5 + $0x1e0] sm:$0xff]
    %v207 = vld [vmem:[#allocation5 + $0x1e8] sm:$0xff]
    %v208 = vld [vmem:[#allocation5 + $0x1f0] sm:$0xff]
    %v209 = vld [vmem:[#allocation5 + $0x1f8] sm:$0xff]
    %v210 = vld [vmem:[#allocation5 + $0x200] sm:$0xff]
    %v211 = vld [vmem:[#allocation5 + $0x208] sm:$0xff]
    %v212 = vld [vmem:[#allocation5 + $0x210] sm:$0xff]
    %v213 = vld [vmem:[#allocation5 + $0x218] sm:$0xff]
    %v214 = vld [vmem:[#allocation5 + $0x220] sm:$0xff]
    %v215 = vld [vmem:[#allocation5 + $0x228] sm:$0xff]
    %v216 = vld [vmem:[#allocation5 + $0x230] sm:$0xff]
    %v217 = vld [vmem:[#allocation5 + $0x238] sm:$0xff]
    %v218 = vld [vmem:[#allocation5 + $0x240] sm:$0xff]
    %v219 = vld [vmem:[#allocation5 + $0x248] sm:$0xff]
    %v220 = vld [vmem:[#allocation5 + $0x250] sm:$0xff]
    %v221 = vld [vmem:[#allocation5 + $0x258] sm:$0xff]
    %v222 = vld [vmem:[#allocation5 + $0x260] sm:$0xff]
    %v223 = vld [vmem:[#allocation5 + $0x268] sm:$0xff]
    %v224 = vld [vmem:[#allocation5 + $0x270] sm:$0xff]
    %v225 = vld [vmem:[#allocation5 + $0x278] sm:$0xff]
    %v226 = vld [vmem:[#allocation5 + $0x280] sm:$0xff]
    %v227 = vld [vmem:[#allocation5 + $0x288] sm:$0xff]
    %v228 = vld [vmem:[#allocation5 + $0x290] sm:$0xff]
    %v229 = vld [vmem:[#allocation5 + $0x298] sm:$0xff]
    %v230 = vld [vmem:[#allocation5 + $0x2a0] sm:$0xff]
    %v231 = vld [vmem:[#allocation5 + $0x2a8] sm:$0xff]
    %v232 = vld [vmem:[#allocation5 + $0x2b0] sm:$0xff]
    %v233 = vld [vmem:[#allocation5 + $0x2b8] sm:$0xff]
    %v234 = vld [vmem:[#allocation5 + $0x2c0] sm:$0xff]
    %v235 = vld [vmem:[#allocation5 + $0x2c8] sm:$0xff]
    %v236 = vld [vmem:[#allocation5 + $0x2d0] sm:$0xff]
    %v237 = vld [vmem:[#allocation5 + $0x2d8] sm:$0xff]
    %v238 = vld [vmem:[#allocation5 + $0x2e0] sm:$0xff]
    %v239 = vld [vmem:[#allocation5 + $0x2e8] sm:$0xff]
    %v240 = vld [vmem:[#allocation5 + $0x2f0] sm:$0xff]
    %v241 = vld [vmem:[#allocation5 + $0x2f8] sm:$0xff]
    %v242 = vld [vmem:[#allocation5 + $0x300] sm:$0xff]
    %v243 = vld [vmem:[#allocation5 + $0x308] sm:$0xff]
    %v244 = vld [vmem:[#allocation5 + $0x310] sm:$0xff]
    %v245 = vld [vmem:[#allocation5 + $0x318] sm:$0xff]
    %v246 = vld [vmem:[#allocation5 + $0x320] sm:$0xff]
    %v247 = vld [vmem:[#allocation5 + $0x328] sm:$0xff]
    %v248 = vld [vmem:[#allocation5 + $0x330] sm:$0xff]
    %v249 = vld [vmem:[#allocation5 + $0x338] sm:$0xff]
    %v250 = vld [vmem:[#allocation5 + $0x340] sm:$0xff]
    %v251 = vld [vmem:[#allocation5 + $0x348] sm:$0xff]
    %v252 = vld [vmem:[#allocation5 + $0x350] sm:$0xff]
    %v253 = vld [vmem:[#allocation5 + $0x358] sm:$0xff]
    %v254 = vld [vmem:[#allocation5 + $0x360] sm:$0xff]
    %v255 = vld [vmem:[#allocation5 + $0x368] sm:$0xff]
    %v256 = vld [vmem:[#allocation5 + $0x370] sm:$0xff]
    %v257 = vld [vmem:[#allocation5 + $0x378] sm:$0xff]
    %v258 = vld [vmem:[#allocation7] sm:$0x3]
    %v260 = vperm.slane %v258, 0
    %v261 = vperm.slane %v258, 1
    %v328 = vunpack.c.l.b16 %v82
    %v329 = vunpack.c.h.b16 %v82
    %v330 = vunpack.c.l.b16 %v83
    %v331 = vunpack.c.h.b16 %v83
    %v332 = vunpack.c.l.b16 %v84
    %v333 = vunpack.c.h.b16 %v84
    %v334 = vunpack.c.l.b16 %v85
    %v335 = vunpack.c.l.b16 %v86
    %v336 = vunpack.c.h.b16 %v86
    %v337 = vunpack.c.l.b16 %v87
    %v338 = vunpack.c.h.b16 %v87
    %v339 = vunpack.c.l.b16 %v88
    %v340 = vunpack.c.h.b16 %v88
    %v341 = vunpack.c.l.b16 %v89
    %v342 = vunpack.c.l.b16 %v90
    %v343 = vunpack.c.h.b16 %v90
    %v344 = vunpack.c.l.b16 %v91
    %v345 = vunpack.c.h.b16 %v91
    %v346 = vunpack.c.l.b16 %v92
    %v347 = vunpack.c.h.b16 %v92
    %v348 = vunpack.c.l.b16 %v93
    %v349 = vunpack.c.l.b16 %v94
    %v350 = vunpack.c.h.b16 %v94
    %v351 = vunpack.c.l.b16 %v95
    %v352 = vunpack.c.h.b16 %v95
    %v353 = vunpack.c.l.b16 %v96
    %v354 = vunpack.c.h.b16 %v96
    %v355 = vunpack.c.l.b16 %v97
    %v356 = vunpack.c.l.b16 %v98
    %v357 = vunpack.c.h.b16 %v98
    %v358 = vunpack.c.l.b16 %v99
    %v359 = vunpack.c.h.b16 %v99
    %v360 = vunpack.c.l.b16 %v100
    %v361 = vunpack.c.h.b16 %v100
    %v362 = vunpack.c.l.b16 %v101
    %v363 = vunpack.c.l.b16 %v102
    %v364 = vunpack.c.h.b16 %v102
    %v365 = vunpack.c.l.b16 %v103
    %v366 = vunpack.c.h.b16 %v103
    %v367 = vunpack.c.l.b16 %v104
    %v368 = vunpack.c.h.b16 %v104
    %v369 = vunpack.c.l.b16 %v105
    %v370 = vunpack.c.l.b16 %v106
    %v371 = vunpack.c.h.b16 %v106
    %v372 = vunpack.c.l.b16 %v107
    %v373 = vunpack.c.h.b16 %v107
    %v374 = vunpack.c.l.b16 %v108
    %v375 = vunpack.c.h.b16 %v108
    %v376 = vunpack.c.l.b16 %v109
    %v377 = vunpack.c.l.b16 %v110
    %v378 = vunpack.c.h.b16 %v110
    %v379 = vunpack.c.l.b16 %v111
    %v380 = vunpack.c.h.b16 %v111
    %v381 = vunpack.c.l.b16 %v112
    %v382 = vunpack.c.h.b16 %v112
    %v383 = vunpack.c.l.b16 %v113
    %v384 = vunpack.c.l.b16 %v114
    %v385 = vunpack.c.h.b16 %v114
    %v386 = vunpack.c.l.b16 %v115
    %v387 = vunpack.c.h.b16 %v115
    %v388 = vunpack.c.l.b16 %v116
    %v389 = vunpack.c.h.b16 %v116
    %v390 = vunpack.c.l.b16 %v117
    %v391 = vunpack.c.l.b16 %v118
    %v392 = vunpack.c.h.b16 %v118
    %v393 = vunpack.c.l.b16 %v119
    %v394 = vunpack.c.h.b16 %v119
    %v395 = vunpack.c.l.b16 %v120
    %v396 = vunpack.c.h.b16 %v120
    %v397 = vunpack.c.l.b16 %v121
    %v398 = vunpack.c.l.b16 %v122
    %v399 = vunpack.c.h.b16 %v122
    %v400 = vunpack.c.l.b16 %v123
    %v401 = vunpack.c.h.b16 %v123
    %v402 = vunpack.c.l.b16 %v124
    %v403 = vunpack.c.h.b16 %v124
    %v404 = vunpack.c.l.b16 %v125
    %v405 = vunpack.c.l.b16 %v126
    %v406 = vunpack.c.h.b16 %v126
    %v407 = vunpack.c.l.b16 %v127
    %v408 = vunpack.c.h.b16 %v127
    %v409 = vunpack.c.l.b16 %v128
    %v410 = vunpack.c.h.b16 %v128
    %v411 = vunpack.c.l.b16 %v129
    %v412 = vunpack.c.l.b16 %v130
    %v413 = vunpack.c.h.b16 %v130
    %v414 = vunpack.c.l.b16 %v131
    %v415 = vunpack.c.h.b16 %v131
    %v416 = vunpack.c.l.b16 %v132
    %v417 = vunpack.c.h.b16 %v132
    %v418 = vunpack.c.l.b16 %v133
    %v419 = vunpack.c.l.b16 %v134
    %v420 = vunpack.c.h.b16 %v134
    %v421 = vunpack.c.l.b16 %v135
    %v422 = vunpack.c.h.b16 %v135
    %v423 = vunpack.c.l.b16 %v136
    %v424 = vunpack.c.h.b16 %v136
    %v425 = vunpack.c.l.b16 %v137
    %v426 = vunpack.c.l.b16 %v138
    %v427 = vunpack.c.h.b16 %v138
    %v428 = vunpack.c.l.b16 %v139
    %v429 = vunpack.c.h.b16 %v139
    %v430 = vunpack.c.l.b16 %v140
    %v431 = vunpack.c.h.b16 %v140
    %v432 = vunpack.c.l.b16 %v141
    %v433 = vunpack.c.l.b16 %v142
    %v434 = vunpack.c.h.b16 %v142
    %v435 = vunpack.c.l.b16 %v143
    %v436 = vunpack.c.h.b16 %v143
    %v437 = vunpack.c.l.b16 %v144
    %v438 = vunpack.c.h.b16 %v144
    %v439 = vunpack.c.l.b16 %v145
    %v440 = vpack.c.b16 %v335, %v328
    %v441 = vpack.c.b16 %v336, %v329
    %v442 = vpack.c.b16 %v337, %v330
    %v443 = vpack.c.b16 %v338, %v331
    %v444 = vpack.c.b16 %v339, %v332
    %v445 = vpack.c.b16 %v340, %v333
    %v446 = vpack.c.b16 %v341, %v334
    %v447 = vpack.c.b16 %v349, %v342
    %v448 = vpack.c.b16 %v350, %v343
    %v449 = vpack.c.b16 %v351, %v344
    %v450 = vpack.c.b16 %v352, %v345
    %v451 = vpack.c.b16 %v353, %v346
    %v452 = vpack.c.b16 %v354, %v347
    %v453 = vpack.c.b16 %v355, %v348
    %v454 = vpack.c.b16 %v363, %v356
    %v455 = vpack.c.b16 %v364, %v357
    %v456 = vpack.c.b16 %v365, %v358
    %v457 = vpack.c.b16 %v366, %v359
    %v458 = vpack.c.b16 %v367, %v360
    %v459 = vpack.c.b16 %v368, %v361
    %v460 = vpack.c.b16 %v369, %v362
    %v461 = vpack.c.b16 %v377, %v370
    %v462 = vpack.c.b16 %v378, %v371
    %v463 = vpack.c.b16 %v379, %v372
    %v464 = vpack.c.b16 %v380, %v373
    %v465 = vpack.c.b16 %v381, %v374
    %v466 = vpack.c.b16 %v382, %v375
    %v467 = vpack.c.b16 %v383, %v376
    %v468 = vpack.c.b16 %v391, %v384
    %v469 = vpack.c.b16 %v392, %v385
    %v470 = vpack.c.b16 %v393, %v386
    %v471 = vpack.c.b16 %v394, %v387
    %v472 = vpack.c.b16 %v395, %v388
    %v473 = vpack.c.b16 %v396, %v389
    %v474 = vpack.c.b16 %v397, %v390
    %v475 = vpack.c.b16 %v405, %v398
    %v476 = vpack.c.b16 %v406, %v399
    %v477 = vpack.c.b16 %v407, %v400
    %v478 = vpack.c.b16 %v408, %v401
    %v479 = vpack.c.b16 %v409, %v402
    %v480 = vpack.c.b16 %v410, %v403
    %v481 = vpack.c.b16 %v411, %v404
    %v482 = vpack.c.b16 %v419, %v412
    %v483 = vpack.c.b16 %v420, %v413
    %v484 = vpack.c.b16 %v421, %v414
    %v485 = vpack.c.b16 %v422, %v415
    %v486 = vpack.c.b16 %v423, %v416
    %v487 = vpack.c.b16 %v424, %v417
    %v488 = vpack.c.b16 %v425, %v418
    %v489 = vpack.c.b16 %v433, %v426
    %v490 = vpack.c.b16 %v434, %v427
    %v491 = vpack.c.b16 %v435, %v428
    %v492 = vpack.c.b16 %v436, %v429
    %v493 = vpack.c.b16 %v437, %v430
    %v494 = vpack.c.b16 %v438, %v431
    %v495 = vpack.c.b16 %v439, %v432
    %v664 = vunpack.c.l.b16 %v146
    %v665 = vunpack.c.h.b16 %v146
    %v666 = vunpack.c.l.b16 %v147
    %v667 = vunpack.c.h.b16 %v147
    %v668 = vunpack.c.l.b16 %v148
    %v669 = vunpack.c.h.b16 %v148
    %v670 = vunpack.c.l.b16 %v149
    %v671 = vunpack.c.h.b16 %v149
    %v672 = vunpack.c.l.b16 %v150
    %v673 = vunpack.c.h.b16 %v150
    %v674 = vunpack.c.l.b16 %v151
    %v675 = vunpack.c.h.b16 %v151
    %v676 = vunpack.c.l.b16 %v152
    %v677 = vunpack.c.h.b16 %v152
    %v678 = vunpack.c.l.b16 %v153
    %v679 = vunpack.c.h.b16 %v153
    %v680 = vunpack.c.l.b16 %v154
    %v681 = vunpack.c.h.b16 %v154
    %v682 = vunpack.c.l.b16 %v155
    %v683 = vunpack.c.h.b16 %v155
    %v684 = vunpack.c.l.b16 %v156
    %v685 = vunpack.c.h.b16 %v156
    %v686 = vunpack.c.l.b16 %v157
    %v687 = vunpack.c.h.b16 %v157
    %v688 = vunpack.c.l.b16 %v158
    %v689 = vunpack.c.h.b16 %v158
    %v690 = vunpack.c.l.b16 %v159
    %v691 = vunpack.c.h.b16 %v159
    %v692 = vunpack.c.l.b16 %v160
    %v693 = vunpack.c.h.b16 %v160
    %v694 = vunpack.c.l.b16 %v161
    %v695 = vunpack.c.h.b16 %v161
    %v696 = vunpack.c.l.b16 %v162
    %v697 = vunpack.c.h.b16 %v162
    %v698 = vunpack.c.l.b16 %v163
    %v699 = vunpack.c.h.b16 %v163
    %v700 = vunpack.c.l.b16 %v164
    %v701 = vunpack.c.h.b16 %v164
    %v702 = vunpack.c.l.b16 %v165
    %v703 = vunpack.c.h.b16 %v165
    %v704 = vunpack.c.l.b16 %v166
    %v705 = vunpack.c.h.b16 %v166
    %v706 = vunpack.c.l.b16 %v167
    %v707 = vunpack.c.h.b16 %v167
    %v708 = vunpack.c.l.b16 %v168
    %v709 = vunpack.c.h.b16 %v168
    %v710 = vunpack.c.l.b16 %v169
    %v711 = vunpack.c.h.b16 %v169
    %v712 = vunpack.c.l.b16 %v170
    %v713 = vunpack.c.h.b16 %v170
    %v714 = vunpack.c.l.b16 %v171
    %v715 = vunpack.c.h.b16 %v171
    %v716 = vunpack.c.l.b16 %v172
    %v717 = vunpack.c.h.b16 %v172
    %v718 = vunpack.c.l.b16 %v173
    %v719 = vunpack.c.h.b16 %v173
    %v720 = vunpack.c.l.b16 %v174
    %v721 = vunpack.c.h.b16 %v174
    %v722 = vunpack.c.l.b16 %v175
    %v723 = vunpack.c.h.b16 %v175
    %v724 = vunpack.c.l.b16 %v176
    %v725 = vunpack.c.h.b16 %v176
    %v726 = vunpack.c.l.b16 %v177
    %v727 = vunpack.c.h.b16 %v177
    %v728 = vunpack.c.l.b16 %v178
    %v729 = vunpack.c.h.b16 %v178
    %v730 = vunpack.c.l.b16 %v179
    %v731 = vunpack.c.h.b16 %v179
    %v732 = vunpack.c.l.b16 %v180
    %v733 = vunpack.c.h.b16 %v180
    %v734 = vunpack.c.l.b16 %v181
    %v735 = vunpack.c.h.b16 %v181
    %v736 = vunpack.c.l.b16 %v182
    %v737 = vunpack.c.h.b16 %v182
    %v738 = vunpack.c.l.b16 %v183
    %v739 = vunpack.c.h.b16 %v183
    %v740 = vunpack.c.l.b16 %v184
    %v741 = vunpack.c.h.b16 %v184
    %v742 = vunpack.c.l.b16 %v185
    %v743 = vunpack.c.h.b16 %v185
    %v744 = vunpack.c.l.b16 %v186
    %v745 = vunpack.c.h.b16 %v186
    %v746 = vunpack.c.l.b16 %v187
    %v747 = vunpack.c.h.b16 %v187
    %v748 = vunpack.c.l.b16 %v188
    %v749 = vunpack.c.h.b16 %v188
    %v750 = vunpack.c.l.b16 %v189
    %v751 = vunpack.c.h.b16 %v189
    %v752 = vunpack.c.l.b16 %v190
    %v753 = vunpack.c.h.b16 %v190
    %v754 = vunpack.c.l.b16 %v191
    %v755 = vunpack.c.h.b16 %v191
    %v756 = vunpack.c.l.b16 %v192
    %v757 = vunpack.c.h.b16 %v192
    %v758 = vunpack.c.l.b16 %v193
    %v759 = vunpack.c.h.b16 %v193
    %v760 = vunpack.c.l.b16 %v194
    %v761 = vunpack.c.h.b16 %v194
    %v762 = vunpack.c.l.b16 %v195
    %v763 = vunpack.c.h.b16 %v195
    %v764 = vunpack.c.l.b16 %v196
    %v765 = vunpack.c.h.b16 %v196
    %v766 = vunpack.c.l.b16 %v197
    %v767 = vunpack.c.h.b16 %v197
    %v768 = vunpack.c.l.b16 %v198
    %v769 = vunpack.c.h.b16 %v198
    %v770 = vunpack.c.l.b16 %v199
    %v771 = vunpack.c.h.b16 %v199
    %v772 = vunpack.c.l.b16 %v200
    %v773 = vunpack.c.h.b16 %v200
    %v774 = vunpack.c.l.b16 %v201
    %v775 = vunpack.c.h.b16 %v201
    %v776 = vunpack.c.l.b16 %v202
    %v777 = vunpack.c.h.b16 %v202
    %v778 = vunpack.c.l.b16 %v203
    %v779 = vunpack.c.h.b16 %v203
    %v780 = vunpack.c.l.b16 %v204
    %v781 = vunpack.c.h.b16 %v204
    %v782 = vunpack.c.l.b16 %v205
    %v783 = vunpack.c.h.b16 %v205
    %v784 = vunpack.c.l.b16 %v206
    %v785 = vunpack.c.h.b16 %v206
    %v786 = vunpack.c.l.b16 %v207
    %v787 = vunpack.c.h.b16 %v207
    %v788 = vunpack.c.l.b16 %v208
    %v789 = vunpack.c.h.b16 %v208
    %v790 = vunpack.c.l.b16 %v209
    %v791 = vunpack.c.h.b16 %v209
    %v792 = vunpack.c.l.b16 %v210
    %v793 = vunpack.c.h.b16 %v210
    %v794 = vunpack.c.l.b16 %v211
    %v795 = vunpack.c.h.b16 %v211
    %v796 = vunpack.c.l.b16 %v212
    %v797 = vunpack.c.h.b16 %v212
    %v798 = vunpack.c.l.b16 %v213
    %v799 = vunpack.c.h.b16 %v213
    %v800 = vunpack.c.l.b16 %v214
    %v801 = vunpack.c.h.b16 %v214
    %v802 = vunpack.c.l.b16 %v215
    %v803 = vunpack.c.h.b16 %v215
    %v804 = vunpack.c.l.b16 %v216
    %v805 = vunpack.c.h.b16 %v216
    %v806 = vunpack.c.l.b16 %v217
    %v807 = vunpack.c.h.b16 %v217
    %v808 = vunpack.c.l.b16 %v218
    %v809 = vunpack.c.h.b16 %v218
    %v810 = vunpack.c.l.b16 %v219
    %v811 = vunpack.c.h.b16 %v219
    %v812 = vunpack.c.l.b16 %v220
    %v813 = vunpack.c.h.b16 %v220
    %v814 = vunpack.c.l.b16 %v221
    %v815 = vunpack.c.h.b16 %v221
    %v816 = vunpack.c.l.b16 %v222
    %v817 = vunpack.c.h.b16 %v222
    %v818 = vunpack.c.l.b16 %v223
    %v819 = vunpack.c.h.b16 %v223
    %v820 = vunpack.c.l.b16 %v224
    %v821 = vunpack.c.h.b16 %v224
    %v822 = vunpack.c.l.b16 %v225
    %v823 = vunpack.c.h.b16 %v225
    %v824 = vunpack.c.l.b16 %v226
    %v825 = vunpack.c.h.b16 %v226
    %v826 = vunpack.c.l.b16 %v227
    %v827 = vunpack.c.h.b16 %v227
    %v828 = vunpack.c.l.b16 %v228
    %v829 = vunpack.c.h.b16 %v228
    %v830 = vunpack.c.l.b16 %v229
    %v831 = vunpack.c.h.b16 %v229
    %v832 = vunpack.c.l.b16 %v230
    %v833 = vunpack.c.h.b16 %v230
    %v834 = vunpack.c.l.b16 %v231
    %v835 = vunpack.c.h.b16 %v231
    %v836 = vunpack.c.l.b16 %v232
    %v837 = vunpack.c.h.b16 %v232
    %v838 = vunpack.c.l.b16 %v233
    %v839 = vunpack.c.h.b16 %v233
    %v840 = vunpack.c.l.b16 %v234
    %v841 = vunpack.c.h.b16 %v234
    %v842 = vunpack.c.l.b16 %v235
    %v843 = vunpack.c.h.b16 %v235
    %v844 = vunpack.c.l.b16 %v236
    %v845 = vunpack.c.h.b16 %v236
    %v846 = vunpack.c.l.b16 %v237
    %v847 = vunpack.c.h.b16 %v237
    %v848 = vunpack.c.l.b16 %v238
    %v849 = vunpack.c.h.b16 %v238
    %v850 = vunpack.c.l.b16 %v239
    %v851 = vunpack.c.h.b16 %v239
    %v852 = vunpack.c.l.b16 %v240
    %v853 = vunpack.c.h.b16 %v240
    %v854 = vunpack.c.l.b16 %v241
    %v855 = vunpack.c.h.b16 %v241
    %v856 = vunpack.c.l.b16 %v242
    %v857 = vunpack.c.h.b16 %v242
    %v858 = vunpack.c.l.b16 %v243
    %v859 = vunpack.c.h.b16 %v243
    %v860 = vunpack.c.l.b16 %v244
    %v861 = vunpack.c.h.b16 %v244
    %v862 = vunpack.c.l.b16 %v245
    %v863 = vunpack.c.h.b16 %v245
    %v864 = vunpack.c.l.b16 %v246
    %v865 = vunpack.c.h.b16 %v246
    %v866 = vunpack.c.l.b16 %v247
    %v867 = vunpack.c.h.b16 %v247
    %v868 = vunpack.c.l.b16 %v248
    %v869 = vunpack.c.h.b16 %v248
    %v870 = vunpack.c.l.b16 %v249
    %v871 = vunpack.c.h.b16 %v249
    %v872 = vunpack.c.l.b16 %v250
    %v873 = vunpack.c.h.b16 %v250
    %v874 = vunpack.c.l.b16 %v251
    %v875 = vunpack.c.h.b16 %v251
    %v876 = vunpack.c.l.b16 %v252
    %v877 = vunpack.c.h.b16 %v252
    %v878 = vunpack.c.l.b16 %v253
    %v879 = vunpack.c.h.b16 %v253
    %v880 = vunpack.c.l.b16 %v254
    %v881 = vunpack.c.h.b16 %v254
    %v882 = vunpack.c.l.b16 %v255
    %v883 = vunpack.c.h.b16 %v255
    %v884 = vunpack.c.l.b16 %v256
    %v885 = vunpack.c.h.b16 %v256
    %v886 = vunpack.c.l.b16 %v257
    %v887 = vunpack.c.h.b16 %v257
    %v888 = vpack.c.b16 %v666, %v664
    %v889 = vpack.c.b16 %v667, %v665
    %v890 = vpack.c.b16 %v670, %v668
    %v891 = vpack.c.b16 %v671, %v669
    %v892 = vpack.c.b16 %v674, %v672
    %v893 = vpack.c.b16 %v675, %v673
    %v894 = vpack.c.b16 %v678, %v676
    %v895 = vpack.c.b16 %v679, %v677
    %v896 = vpack.c.b16 %v682, %v680
    %v897 = vpack.c.b16 %v683, %v681
    %v898 = vpack.c.b16 %v686, %v684
    %v899 = vpack.c.b16 %v687, %v685
    %v900 = vpack.c.b16 %v690, %v688
    %v901 = vpack.c.b16 %v691, %v689
    %v902 = vpack.c.b16 %v694, %v692
    %v903 = vpack.c.b16 %v695, %v693
    %v904 = vpack.c.b16 %v698, %v696
    %v905 = vpack.c.b16 %v699, %v697
    %v906 = vpack.c.b16 %v702, %v700
    %v907 = vpack.c.b16 %v703, %v701
    %v908 = vpack.c.b16 %v706, %v704
    %v909 = vpack.c.b16 %v707, %v705
    %v910 = vpack.c.b16 %v710, %v708
    %v911 = vpack.c.b16 %v711, %v709
    %v912 = vpack.c.b16 %v714, %v712
    %v913 = vpack.c.b16 %v715, %v713
    %v914 = vpack.c.b16 %v718, %v716
    %v915 = vpack.c.b16 %v719, %v717
    %v916 = vpack.c.b16 %v722, %v720
    %v917 = vpack.c.b16 %v723, %v721
    %v918 = vpack.c.b16 %v726, %v724
    %v919 = vpack.c.b16 %v727, %v725
    %v920 = vpack.c.b16 %v730, %v728
    %v921 = vpack.c.b16 %v731, %v729
    %v922 = vpack.c.b16 %v734, %v732
    %v923 = vpack.c.b16 %v735, %v733
    %v924 = vpack.c.b16 %v738, %v736
    %v925 = vpack.c.b16 %v739, %v737
    %v926 = vpack.c.b16 %v742, %v740
    %v927 = vpack.c.b16 %v743, %v741
    %v928 = vpack.c.b16 %v746, %v744
    %v929 = vpack.c.b16 %v747, %v745
    %v930 = vpack.c.b16 %v750, %v748
    %v931 = vpack.c.b16 %v751, %v749
    %v932 = vpack.c.b16 %v754, %v752
    %v933 = vpack.c.b16 %v755, %v753
    %v934 = vpack.c.b16 %v758, %v756
    %v935 = vpack.c.b16 %v759, %v757
    %v936 = vpack.c.b16 %v762, %v760
    %v937 = vpack.c.b16 %v763, %v761
    %v938 = vpack.c.b16 %v766, %v764
    %v939 = vpack.c.b16 %v767, %v765
    %v940 = vpack.c.b16 %v770, %v768
    %v941 = vpack.c.b16 %v771, %v769
    %v942 = vpack.c.b16 %v774, %v772
    %v943 = vpack.c.b16 %v775, %v773
    %v944 = vpack.c.b16 %v778, %v776
    %v945 = vpack.c.b16 %v779, %v777
    %v946 = vpack.c.b16 %v782, %v780
    %v947 = vpack.c.b16 %v783, %v781
    %v948 = vpack.c.b16 %v786, %v784
    %v949 = vpack.c.b16 %v787, %v785
    %v950 = vpack.c.b16 %v790, %v788
    %v951 = vpack.c.b16 %v791, %v789
    %v952 = vpack.c.b16 %v794, %v792
    %v953 = vpack.c.b16 %v795, %v793
    %v954 = vpack.c.b16 %v798, %v796
    %v955 = vpack.c.b16 %v799, %v797
    %v956 = vpack.c.b16 %v802, %v800
    %v957 = vpack.c.b16 %v803, %v801
    %v958 = vpack.c.b16 %v806, %v804
    %v959 = vpack.c.b16 %v807, %v805
    %v960 = vpack.c.b16 %v810, %v808
    %v961 = vpack.c.b16 %v811, %v809
    %v962 = vpack.c.b16 %v814, %v812
    %v963 = vpack.c.b16 %v815, %v813
    %v964 = vpack.c.b16 %v818, %v816
    %v965 = vpack.c.b16 %v819, %v817
    %v966 = vpack.c.b16 %v822, %v820
    %v967 = vpack.c.b16 %v823, %v821
    %v968 = vpack.c.b16 %v826, %v824
    %v969 = vpack.c.b16 %v827, %v825
    %v970 = vpack.c.b16 %v830, %v828
    %v971 = vpack.c.b16 %v831, %v829
    %v972 = vpack.c.b16 %v834, %v832
    %v973 = vpack.c.b16 %v835, %v833
    %v974 = vpack.c.b16 %v838, %v836
    %v975 = vpack.c.b16 %v839, %v837
    %v976 = vpack.c.b16 %v842, %v840
    %v977 = vpack.c.b16 %v843, %v841
    %v978 = vpack.c.b16 %v846, %v844
    %v979 = vpack.c.b16 %v847, %v845
    %v980 = vpack.c.b16 %v850, %v848
    %v981 = vpack.c.b16 %v851, %v849
    %v982 = vpack.c.b16 %v854, %v852
    %v983 = vpack.c.b16 %v855, %v853
    %v984 = vpack.c.b16 %v858, %v856
    %v985 = vpack.c.b16 %v859, %v857
    %v986 = vpack.c.b16 %v862, %v860
    %v987 = vpack.c.b16 %v863, %v861
    %v988 = vpack.c.b16 %v866, %v864
    %v989 = vpack.c.b16 %v867, %v865
    %v990 = vpack.c.b16 %v870, %v868
    %v991 = vpack.c.b16 %v871, %v869
    %v992 = vpack.c.b16 %v874, %v872
    %v993 = vpack.c.b16 %v875, %v873
    %v994 = vpack.c.b16 %v878, %v876
    %v995 = vpack.c.b16 %v879, %v877
    %v996 = vpack.c.b16 %v882, %v880
    %v997 = vpack.c.b16 %v883, %v881
    %v998 = vpack.c.b16 %v886, %v884
    %v999 = vpack.c.b16 %v887, %v885
    %1112 = vmatpush.bf16.msra.mxu0 %v902
    %1113 = vmatpush.bf16.msra.mxu0 %v900
    %1114 = vmatpush.bf16.msra.mxu0 %v898
    %1115 = vmatpush.bf16.msra.mxu0 %v896
    %1116 = vmatpush.bf16.msra.mxu0 %v894
    %1117 = vmatpush.bf16.msra.mxu0 %v892
    %1118 = vmatpush.bf16.msra.mxu0 %v890
    %1119 = vmatpush.bf16.msra.mxu0 %v888
    %1120 = vmatmul.bf16.gmra.mxu0 %v440
    %v1121 = vpop.f32.mrf.mxu0
    %v1122 = vadd.f32 %v260, %v1121
    %v1123 = vpop.f32.mrf.mxu0
    %v1124 = vadd.f32 %v260, %v1123
    %1125 = vmatmul.bf16.gmra.mxu0 %v447
    %v1126 = vpop.f32.mrf.mxu0
    %v1127 = vadd.f32 %v260, %v1126
    %v1128 = vpop.f32.mrf.mxu0
    %v1129 = vadd.f32 %v260, %v1128
    %1130 = vmatmul.bf16.gmra.mxu0 %v454
    %v1131 = vpop.f32.mrf.mxu0
    %v1132 = vadd.f32 %v260, %v1131
    %v1133 = vpop.f32.mrf.mxu0
    %v1134 = vadd.f32 %v260, %v1133
    %1135 = vmatmul.bf16.gmra.mxu0 %v461
    %v1136 = vpop.f32.mrf.mxu0
    %v1137 = vadd.f32 %v260, %v1136
    %v1138 = vpop.f32.mrf.mxu0
    %v1139 = vadd.f32 %v260, %v1138
    %1140 = vmatmul.bf16.gmra.mxu0 %v468
    %v1141 = vpop.f32.mrf.mxu0
    %v1142 = vadd.f32 %v260, %v1141
    %v1143 = vpop.f32.mrf.mxu0
    %v1144 = vadd.f32 %v260, %v1143
    %1145 = vmatmul.bf16.gmra.mxu0 %v475
    %v1146 = vpop.f32.mrf.mxu0
    %v1147 = vadd.f32 %v260, %v1146
    %v1148 = vpop.f32.mrf.mxu0
    %v1149 = vadd.f32 %v260, %v1148
    %1150 = vmatmul.bf16.gmra.mxu0 %v482
    %v1151 = vpop.f32.mrf.mxu0
    %v1152 = vadd.f32 %v260, %v1151
    %v1153 = vpop.f32.mrf.mxu0
    %v1154 = vadd.f32 %v260, %v1153
    %1155 = vmatmul.bf16.gmra.mxu0 %v489
    %v1156 = vpop.f32.mrf.mxu0
    %v1157 = vadd.f32 %v260, %v1156
    %v1158 = vpop.f32.mrf.mxu0
    %v1159 = vadd.f32 %v260, %v1158
    %1160 = vdwg.mxu0
    %1161 = vmatpush.bf16.msra.mxu0 %v918
    %1162 = vmatpush.bf16.msra.mxu0 %v916
    %1163 = vmatpush.bf16.msra.mxu0 %v914
    %1164 = vmatpush.bf16.msra.mxu0 %v912
    %1165 = vmatpush.bf16.msra.mxu0 %v910
    %1166 = vmatpush.bf16.msra.mxu0 %v908
    %1167 = vmatpush.bf16.msra.mxu0 %v906
    %1168 = vmatpush.bf16.msra.mxu0 %v904
    %1169 = vmatmul.bf16.gmra.mxu0 %v441
    %v1170 = vpop.f32.mrf.mxu0
    %v1171 = vadd.f32 %v1122, %v1170
    %v1172 = vpop.f32.mrf.mxu0
    %v1173 = vadd.f32 %v1124, %v1172
    %1174 = vmatmul.bf16.gmra.mxu0 %v448
    %v1175 = vpop.f32.mrf.mxu0
    %v1176 = vadd.f32 %v1127, %v1175
    %v1177 = vpop.f32.mrf.mxu0
    %v1178 = vadd.f32 %v1129, %v1177
    %1179 = vmatmul.bf16.gmra.mxu0 %v455
    %v1180 = vpop.f32.mrf.mxu0
    %v1181 = vadd.f32 %v1132, %v1180
    %v1182 = vpop.f32.mrf.mxu0
    %v1183 = vadd.f32 %v1134, %v1182
    %1184 = vmatmul.bf16.gmra.mxu0 %v462
    %v1185 = vpop.f32.mrf.mxu0
    %v1186 = vadd.f32 %v1137, %v1185
    %v1187 = vpop.f32.mrf.mxu0
    %v1188 = vadd.f32 %v1139, %v1187
    %1189 = vmatmul.bf16.gmra.mxu0 %v469
    %v1190 = vpop.f32.mrf.mxu0
    %v1191 = vadd.f32 %v1142, %v1190
    %v1192 = vpop.f32.mrf.mxu0
    %v1193 = vadd.f32 %v1144, %v1192
    %1194 = vmatmul.bf16.gmra.mxu0 %v476
    %v1195 = vpop.f32.mrf.mxu0
    %v1196 = vadd.f32 %v1147, %v1195
    %v1197 = vpop.f32.mrf.mxu0
    %v1198 = vadd.f32 %v1149, %v1197
    %1199 = vmatmul.bf16.gmra.mxu0 %v483
    %v1200 = vpop.f32.mrf.mxu0
    %v1201 = vadd.f32 %v1152, %v1200
    %v1202 = vpop.f32.mrf.mxu0
    %v1203 = vadd.f32 %v1154, %v1202
    %1204 = vmatmul.bf16.gmra.mxu0 %v490
    %v1205 = vpop.f32.mrf.mxu0
    %v1206 = vadd.f32 %v1157, %v1205
    %v1207 = vpop.f32.mrf.mxu0
    %v1208 = vadd.f32 %v1159, %v1207
    %1209 = vdwg.mxu0
    %1210 = vmatpush.bf16.msra.mxu0 %v934
    %1211 = vmatpush.bf16.msra.mxu0 %v932
    %1212 = vmatpush.bf16.msra.mxu0 %v930
    %1213 = vmatpush.bf16.msra.mxu0 %v928
    %1214 = vmatpush.bf16.msra.mxu0 %v926
    %1215 = vmatpush.bf16.msra.mxu0 %v924
    %1216 = vmatpush.bf16.msra.mxu0 %v922
    %1217 = vmatpush.bf16.msra.mxu0 %v920
    %1218 = vmatmul.bf16.gmra.mxu0 %v442
    %v1219 = vpop.f32.mrf.mxu0
    %v1220 = vadd.f32 %v1171, %v1219
    %v1221 = vpop.f32.mrf.mxu0
    %v1222 = vadd.f32 %v1173, %v1221
    %1223 = vmatmul.bf16.gmra.mxu0 %v449
    %v1224 = vpop.f32.mrf.mxu0
    %v1225 = vadd.f32 %v1176, %v1224
    %v1226 = vpop.f32.mrf.mxu0
    %v1227 = vadd.f32 %v1178, %v1226
    %1228 = vmatmul.bf16.gmra.mxu0 %v456
    %v1229 = vpop.f32.mrf.mxu0
    %v1230 = vadd.f32 %v1181, %v1229
    %v1231 = vpop.f32.mrf.mxu0
    %v1232 = vadd.f32 %v1183, %v1231
    %1233 = vmatmul.bf16.gmra.mxu0 %v463
    %v1234 = vpop.f32.mrf.mxu0
    %v1235 = vadd.f32 %v1186, %v1234
    %v1236 = vpop.f32.mrf.mxu0
    %v1237 = vadd.f32 %v1188, %v1236
    %1238 = vmatmul.bf16.gmra.mxu0 %v470
    %v1239 = vpop.f32.mrf.mxu0
    %v1240 = vadd.f32 %v1191, %v1239
    %v1241 = vpop.f32.mrf.mxu0
    %v1242 = vadd.f32 %v1193, %v1241
    %1243 = vmatmul.bf16.gmra.mxu0 %v477
    %v1244 = vpop.f32.mrf.mxu0
    %v1245 = vadd.f32 %v1196, %v1244
    %v1246 = vpop.f32.mrf.mxu0
    %v1247 = vadd.f32 %v1198, %v1246
    %1248 = vmatmul.bf16.gmra.mxu0 %v484
    %v1249 = vpop.f32.mrf.mxu0
    %v1250 = vadd.f32 %v1201, %v1249
    %v1251 = vpop.f32.mrf.mxu0
    %v1252 = vadd.f32 %v1203, %v1251
    %1253 = vmatmul.bf16.gmra.mxu0 %v491
    %v1254 = vpop.f32.mrf.mxu0
    %v1255 = vadd.f32 %v1206, %v1254
    %v1256 = vpop.f32.mrf.mxu0
    %v1257 = vadd.f32 %v1208, %v1256
    %1258 = vdwg.mxu0
    %1259 = vmatpush.bf16.msra.mxu0 %v950
    %1260 = vmatpush.bf16.msra.mxu0 %v948
    %1261 = vmatpush.bf16.msra.mxu0 %v946
    %1262 = vmatpush.bf16.msra.mxu0 %v944
    %1263 = vmatpush.bf16.msra.mxu0 %v942
    %1264 = vmatpush.bf16.msra.mxu0 %v940
    %1265 = vmatpush.bf16.msra.mxu0 %v938
    %1266 = vmatpush.bf16.msra.mxu0 %v936
    %1267 = vmatmul.bf16.gmra.mxu0 %v443
    %v1268 = vpop.f32.mrf.mxu0
    %v1269 = vadd.f32 %v1220, %v1268
    %v1270 = vpop.f32.mrf.mxu0
    %v1271 = vadd.f32 %v1222, %v1270
    %1272 = vmatmul.bf16.gmra.mxu0 %v450
    %v1273 = vpop.f32.mrf.mxu0
    %v1274 = vadd.f32 %v1225, %v1273
    %v1275 = vpop.f32.mrf.mxu0
    %v1276 = vadd.f32 %v1227, %v1275
    %1277 = vmatmul.bf16.gmra.mxu0 %v457
    %v1278 = vpop.f32.mrf.mxu0
    %v1279 = vadd.f32 %v1230, %v1278
    %v1280 = vpop.f32.mrf.mxu0
    %v1281 = vadd.f32 %v1232, %v1280
    %1282 = vmatmul.bf16.gmra.mxu0 %v464
    %v1283 = vpop.f32.mrf.mxu0
    %v1284 = vadd.f32 %v1235, %v1283
    %v1285 = vpop.f32.mrf.mxu0
    %v1286 = vadd.f32 %v1237, %v1285
    %1287 = vmatmul.bf16.gmra.mxu0 %v471
    %v1288 = vpop.f32.mrf.mxu0
    %v1289 = vadd.f32 %v1240, %v1288
    %v1290 = vpop.f32.mrf.mxu0
    %v1291 = vadd.f32 %v1242, %v1290
    %1292 = vmatmul.bf16.gmra.mxu0 %v478
    %v1293 = vpop.f32.mrf.mxu0
    %v1294 = vadd.f32 %v1245, %v1293
    %v1295 = vpop.f32.mrf.mxu0
    %v1296 = vadd.f32 %v1247, %v1295
    %1297 = vmatmul.bf16.gmra.mxu0 %v485
    %v1298 = vpop.f32.mrf.mxu0
    %v1299 = vadd.f32 %v1250, %v1298
    %v1300 = vpop.f32.mrf.mxu0
    %v1301 = vadd.f32 %v1252, %v1300
    %1302 = vmatmul.bf16.gmra.mxu0 %v492
    %v1303 = vpop.f32.mrf.mxu0
    %v1304 = vadd.f32 %v1255, %v1303
    %v1305 = vpop.f32.mrf.mxu0
    %v1306 = vadd.f32 %v1257, %v1305
    %1307 = vdwg.mxu0
    %1308 = vmatpush.bf16.msra.mxu0 %v966
    %1309 = vmatpush.bf16.msra.mxu0 %v964
    %1310 = vmatpush.bf16.msra.mxu0 %v962
    %1311 = vmatpush.bf16.msra.mxu0 %v960
    %1312 = vmatpush.bf16.msra.mxu0 %v958
    %1313 = vmatpush.bf16.msra.mxu0 %v956
    %1314 = vmatpush.bf16.msra.mxu0 %v954
    %1315 = vmatpush.bf16.msra.mxu0 %v952
    %1316 = vmatmul.bf16.gmra.mxu0 %v444
    %v1317 = vpop.f32.mrf.mxu0
    %v1318 = vadd.f32 %v1269, %v1317
    %v1319 = vpop.f32.mrf.mxu0
    %v1320 = vadd.f32 %v1271, %v1319
    %1321 = vmatmul.bf16.gmra.mxu0 %v451
    %v1322 = vpop.f32.mrf.mxu0
    %v1323 = vadd.f32 %v1274, %v1322
    %v1324 = vpop.f32.mrf.mxu0
    %v1325 = vadd.f32 %v1276, %v1324
    %1326 = vmatmul.bf16.gmra.mxu0 %v458
    %v1327 = vpop.f32.mrf.mxu0
    %v1328 = vadd.f32 %v1279, %v1327
    %v1329 = vpop.f32.mrf.mxu0
    %v1330 = vadd.f32 %v1281, %v1329
    %1331 = vmatmul.bf16.gmra.mxu0 %v465
    %v1332 = vpop.f32.mrf.mxu0
    %v1333 = vadd.f32 %v1284, %v1332
    %v1334 = vpop.f32.mrf.mxu0
    %v1335 = vadd.f32 %v1286, %v1334
    %1336 = vmatmul.bf16.gmra.mxu0 %v472
    %v1337 = vpop.f32.mrf.mxu0
    %v1338 = vadd.f32 %v1289, %v1337
    %v1339 = vpop.f32.mrf.mxu0
    %v1340 = vadd.f32 %v1291, %v1339
    %1341 = vmatmul.bf16.gmra.mxu0 %v479
    %v1342 = vpop.f32.mrf.mxu0
    %v1343 = vadd.f32 %v1294, %v1342
    %v1344 = vpop.f32.mrf.mxu0
    %v1345 = vadd.f32 %v1296, %v1344
    %1346 = vmatmul.bf16.gmra.mxu0 %v486
    %v1347 = vpop.f32.mrf.mxu0
    %v1348 = vadd.f32 %v1299, %v1347
    %v1349 = vpop.f32.mrf.mxu0
    %v1350 = vadd.f32 %v1301, %v1349
    %1351 = vmatmul.bf16.gmra.mxu0 %v493
    %v1352 = vpop.f32.mrf.mxu0
    %v1353 = vadd.f32 %v1304, %v1352
    %v1354 = vpop.f32.mrf.mxu0
    %v1355 = vadd.f32 %v1306, %v1354
    %1356 = vdwg.mxu0
    %1357 = vmatpush.bf16.msra.mxu0 %v982
    %1358 = vmatpush.bf16.msra.mxu0 %v980
    %1359 = vmatpush.bf16.msra.mxu0 %v978
    %1360 = vmatpush.bf16.msra.mxu0 %v976
    %1361 = vmatpush.bf16.msra.mxu0 %v974
    %1362 = vmatpush.bf16.msra.mxu0 %v972
    %1363 = vmatpush.bf16.msra.mxu0 %v970
    %1364 = vmatpush.bf16.msra.mxu0 %v968
    %1365 = vmatmul.bf16.gmra.mxu0 %v445
    %v1366 = vpop.f32.mrf.mxu0
    %v1367 = vadd.f32 %v1318, %v1366
    %v1368 = vpop.f32.mrf.mxu0
    %v1369 = vadd.f32 %v1320, %v1368
    %1370 = vmatmul.bf16.gmra.mxu0 %v452
    %v1371 = vpop.f32.mrf.mxu0
    %v1372 = vadd.f32 %v1323, %v1371
    %v1373 = vpop.f32.mrf.mxu0
    %v1374 = vadd.f32 %v1325, %v1373
    %1375 = vmatmul.bf16.gmra.mxu0 %v459
    %v1376 = vpop.f32.mrf.mxu0
    %v1377 = vadd.f32 %v1328, %v1376
    %v1378 = vpop.f32.mrf.mxu0
    %v1379 = vadd.f32 %v1330, %v1378
    %1380 = vmatmul.bf16.gmra.mxu0 %v466
    %v1381 = vpop.f32.mrf.mxu0
    %v1382 = vadd.f32 %v1333, %v1381
    %v1383 = vpop.f32.mrf.mxu0
    %v1384 = vadd.f32 %v1335, %v1383
    %1385 = vmatmul.bf16.gmra.mxu0 %v473
    %v1386 = vpop.f32.mrf.mxu0
    %v1387 = vadd.f32 %v1338, %v1386
    %v1388 = vpop.f32.mrf.mxu0
    %v1389 = vadd.f32 %v1340, %v1388
    %1390 = vmatmul.bf16.gmra.mxu0 %v480
    %v1391 = vpop.f32.mrf.mxu0
    %v1392 = vadd.f32 %v1343, %v1391
    %v1393 = vpop.f32.mrf.mxu0
    %v1394 = vadd.f32 %v1345, %v1393
    %1395 = vmatmul.bf16.gmra.mxu0 %v487
    %v1396 = vpop.f32.mrf.mxu0
    %v1397 = vadd.f32 %v1348, %v1396
    %v1398 = vpop.f32.mrf.mxu0
    %v1399 = vadd.f32 %v1350, %v1398
    %1400 = vmatmul.bf16.gmra.mxu0 %v494
    %v1401 = vpop.f32.mrf.mxu0
    %v1402 = vadd.f32 %v1353, %v1401
    %v1403 = vpop.f32.mrf.mxu0
    %v1404 = vadd.f32 %v1355, %v1403
    %1405 = vdwg.mxu0
    %1406 = vmatpush.bf16.msra.mxu0 %v998
    %1407 = vmatpush.bf16.msra.mxu0 %v996
    %1408 = vmatpush.bf16.msra.mxu0 %v994
    %1409 = vmatpush.bf16.msra.mxu0 %v992
    %1410 = vmatpush.bf16.msra.mxu0 %v990
    %1411 = vmatpush.bf16.msra.mxu0 %v988
    %1412 = vmatpush.bf16.msra.mxu0 %v986
    %1413 = vmatpush.bf16.msra.mxu0 %v984
    %1414 = vmatmul.bf16.gmra.mxu0 %v446
    %v1415 = vpop.f32.mrf.mxu0
    %v1416 = vadd.f32 %v1367, %v1415
    %v1417 = vpop.f32.mrf.mxu0
    %v1418 = vadd.f32 %v1369, %v1417
    %1419 = vmatmul.bf16.gmra.mxu0 %v453
    %v1420 = vpop.f32.mrf.mxu0
    %v1421 = vadd.f32 %v1372, %v1420
    %v1422 = vpop.f32.mrf.mxu0
    %v1423 = vadd.f32 %v1374, %v1422
    %1424 = vmatmul.bf16.gmra.mxu0 %v460
    %v1425 = vpop.f32.mrf.mxu0
    %v1426 = vadd.f32 %v1377, %v1425
    %v1427 = vpop.f32.mrf.mxu0
    %v1428 = vadd.f32 %v1379, %v1427
    %1429 = vmatmul.bf16.gmra.mxu0 %v467
    %v1430 = vpop.f32.mrf.mxu0
    %v1431 = vadd.f32 %v1382, %v1430
    %v1432 = vpop.f32.mrf.mxu0
    %v1433 = vadd.f32 %v1384, %v1432
    %1434 = vmatmul.bf16.gmra.mxu0 %v474
    %v1435 = vpop.f32.mrf.mxu0
    %v1436 = vadd.f32 %v1387, %v1435
    %v1437 = vpop.f32.mrf.mxu0
    %v1438 = vadd.f32 %v1389, %v1437
    %1439 = vmatmul.bf16.gmra.mxu0 %v481
    %v1440 = vpop.f32.mrf.mxu0
    %v1441 = vadd.f32 %v1392, %v1440
    %v1442 = vpop.f32.mrf.mxu0
    %v1443 = vadd.f32 %v1394, %v1442
    %1444 = vmatmul.bf16.gmra.mxu0 %v488
    %v1445 = vpop.f32.mrf.mxu0
    %v1446 = vadd.f32 %v1397, %v1445
    %v1447 = vpop.f32.mrf.mxu0
    %v1448 = vadd.f32 %v1399, %v1447
    %1449 = vmatmul.bf16.gmra.mxu0 %v495
    %v1450 = vpop.f32.mrf.mxu0
    %v1451 = vadd.f32 %v1402, %v1450
    %v1452 = vpop.f32.mrf.mxu0
    %v1453 = vadd.f32 %v1404, %v1452
    %1454 = vdwg.mxu0
    %1455 = vmatpush.bf16.msra.mxu0 %v903
    %1456 = vmatpush.bf16.msra.mxu0 %v901
    %1457 = vmatpush.bf16.msra.mxu0 %v899
    %1458 = vmatpush.bf16.msra.mxu0 %v897
    %1459 = vmatpush.bf16.msra.mxu0 %v895
    %1460 = vmatpush.bf16.msra.mxu0 %v893
    %1461 = vmatpush.bf16.msra.mxu0 %v891
    %1462 = vmatpush.bf16.msra.mxu0 %v889
    %1463 = vmatmul.bf16.gmra.mxu0 %v440
    %v1464 = vpop.f32.mrf.mxu0
    %v1465 = vadd.f32 %v261, %v1464
    %v1466 = vpop.f32.mrf.mxu0
    %v1467 = vadd.f32 %v261, %v1466
    %1468 = vmatmul.bf16.gmra.mxu0 %v447
    %v1469 = vpop.f32.mrf.mxu0
    %v1470 = vadd.f32 %v261, %v1469
    %v1471 = vpop.f32.mrf.mxu0
    %v1472 = vadd.f32 %v261, %v1471
    %1473 = vmatmul.bf16.gmra.mxu0 %v454
    %v1474 = vpop.f32.mrf.mxu0
    %v1475 = vadd.f32 %v261, %v1474
    %v1476 = vpop.f32.mrf.mxu0
    %v1477 = vadd.f32 %v261, %v1476
    %1478 = vmatmul.bf16.gmra.mxu0 %v461
    %v1479 = vpop.f32.mrf.mxu0
    %v1480 = vadd.f32 %v261, %v1479
    %v1481 = vpop.f32.mrf.mxu0
    %v1482 = vadd.f32 %v261, %v1481
    %1483 = vmatmul.bf16.gmra.mxu0 %v468
    %v1484 = vpop.f32.mrf.mxu0
    %v1485 = vadd.f32 %v261, %v1484
    %v1486 = vpop.f32.mrf.mxu0
    %v1487 = vadd.f32 %v261, %v1486
    %1488 = vmatmul.bf16.gmra.mxu0 %v475
    %v1489 = vpop.f32.mrf.mxu0
    %v1490 = vadd.f32 %v261, %v1489
    %v1491 = vpop.f32.mrf.mxu0
    %v1492 = vadd.f32 %v261, %v1491
    %1493 = vmatmul.bf16.gmra.mxu0 %v482
    %v1494 = vpop.f32.mrf.mxu0
    %v1495 = vadd.f32 %v261, %v1494
    %v1496 = vpop.f32.mrf.mxu0
    %v1497 = vadd.f32 %v261, %v1496
    %1498 = vmatmul.bf16.gmra.mxu0 %v489
    %v1499 = vpop.f32.mrf.mxu0
    %v1500 = vadd.f32 %v261, %v1499
    %v1501 = vpop.f32.mrf.mxu0
    %v1502 = vadd.f32 %v261, %v1501
    %1503 = vdwg.mxu0
    %1504 = vmatpush.bf16.msra.mxu0 %v919
    %1505 = vmatpush.bf16.msra.mxu0 %v917
    %1506 = vmatpush.bf16.msra.mxu0 %v915
    %1507 = vmatpush.bf16.msra.mxu0 %v913
    %1508 = vmatpush.bf16.msra.mxu0 %v911
    %1509 = vmatpush.bf16.msra.mxu0 %v909
    %1510 = vmatpush.bf16.msra.mxu0 %v907
    %1511 = vmatpush.bf16.msra.mxu0 %v905
    %1512 = vmatmul.bf16.gmra.mxu0 %v441
    %v1513 = vpop.f32.mrf.mxu0
    %v1514 = vadd.f32 %v1465, %v1513
    %v1515 = vpop.f32.mrf.mxu0
    %v1516 = vadd.f32 %v1467, %v1515
    %1517 = vmatmul.bf16.gmra.mxu0 %v448
    %v1518 = vpop.f32.mrf.mxu0
    %v1519 = vadd.f32 %v1470, %v1518
    %v1520 = vpop.f32.mrf.mxu0
    %v1521 = vadd.f32 %v1472, %v1520
    %1522 = vmatmul.bf16.gmra.mxu0 %v455
    %v1523 = vpop.f32.mrf.mxu0
    %v1524 = vadd.f32 %v1475, %v1523
    %v1525 = vpop.f32.mrf.mxu0
    %v1526 = vadd.f32 %v1477, %v1525
    %1527 = vmatmul.bf16.gmra.mxu0 %v462
    %v1528 = vpop.f32.mrf.mxu0
    %v1529 = vadd.f32 %v1480, %v1528
    %v1530 = vpop.f32.mrf.mxu0
    %v1531 = vadd.f32 %v1482, %v1530
    %1532 = vmatmul.bf16.gmra.mxu0 %v469
    %v1533 = vpop.f32.mrf.mxu0
    %v1534 = vadd.f32 %v1485, %v1533
    %v1535 = vpop.f32.mrf.mxu0
    %v1536 = vadd.f32 %v1487, %v1535
    %1537 = vmatmul.bf16.gmra.mxu0 %v476
    %v1538 = vpop.f32.mrf.mxu0
    %v1539 = vadd.f32 %v1490, %v1538
    %v1540 = vpop.f32.mrf.mxu0
    %v1541 = vadd.f32 %v1492, %v1540
    %1542 = vmatmul.bf16.gmra.mxu0 %v483
    %v1543 = vpop.f32.mrf.mxu0
    %v1544 = vadd.f32 %v1495, %v1543
    %v1545 = vpop.f32.mrf.mxu0
    %v1546 = vadd.f32 %v1497, %v1545
    %1547 = vmatmul.bf16.gmra.mxu0 %v490
    %v1548 = vpop.f32.mrf.mxu0
    %v1549 = vadd.f32 %v1500, %v1548
    %v1550 = vpop.f32.mrf.mxu0
    %v1551 = vadd.f32 %v1502, %v1550
    %1552 = vdwg.mxu0
    %1553 = vmatpush.bf16.msra.mxu0 %v935
    %1554 = vmatpush.bf16.msra.mxu0 %v933
    %1555 = vmatpush.bf16.msra.mxu0 %v931
    %1556 = vmatpush.bf16.msra.mxu0 %v929
    %1557 = vmatpush.bf16.msra.mxu0 %v927
    %1558 = vmatpush.bf16.msra.mxu0 %v925
    %1559 = vmatpush.bf16.msra.mxu0 %v923
    %1560 = vmatpush.bf16.msra.mxu0 %v921
    %1561 = vmatmul.bf16.gmra.mxu0 %v442
    %v1562 = vpop.f32.mrf.mxu0
    %v1563 = vadd.f32 %v1514, %v1562
    %v1564 = vpop.f32.mrf.mxu0
    %v1565 = vadd.f32 %v1516, %v1564
    %1566 = vmatmul.bf16.gmra.mxu0 %v449
    %v1567 = vpop.f32.mrf.mxu0
    %v1568 = vadd.f32 %v1519, %v1567
    %v1569 = vpop.f32.mrf.mxu0
    %v1570 = vadd.f32 %v1521, %v1569
    %1571 = vmatmul.bf16.gmra.mxu0 %v456
    %v1572 = vpop.f32.mrf.mxu0
    %v1573 = vadd.f32 %v1524, %v1572
    %v1574 = vpop.f32.mrf.mxu0
    %v1575 = vadd.f32 %v1526, %v1574
    %1576 = vmatmul.bf16.gmra.mxu0 %v463
    %v1577 = vpop.f32.mrf.mxu0
    %v1578 = vadd.f32 %v1529, %v1577
    %v1579 = vpop.f32.mrf.mxu0
    %v1580 = vadd.f32 %v1531, %v1579
    %1581 = vmatmul.bf16.gmra.mxu0 %v470
    %v1582 = vpop.f32.mrf.mxu0
    %v1583 = vadd.f32 %v1534, %v1582
    %v1584 = vpop.f32.mrf.mxu0
    %v1585 = vadd.f32 %v1536, %v1584
    %1586 = vmatmul.bf16.gmra.mxu0 %v477
    %v1587 = vpop.f32.mrf.mxu0
    %v1588 = vadd.f32 %v1539, %v1587
    %v1589 = vpop.f32.mrf.mxu0
    %v1590 = vadd.f32 %v1541, %v1589
    %1591 = vmatmul.bf16.gmra.mxu0 %v484
    %v1592 = vpop.f32.mrf.mxu0
    %v1593 = vadd.f32 %v1544, %v1592
    %v1594 = vpop.f32.mrf.mxu0
    %v1595 = vadd.f32 %v1546, %v1594
    %1596 = vmatmul.bf16.gmra.mxu0 %v491
    %v1597 = vpop.f32.mrf.mxu0
    %v1598 = vadd.f32 %v1549, %v1597
    %v1599 = vpop.f32.mrf.mxu0
    %v1600 = vadd.f32 %v1551, %v1599
    %1601 = vdwg.mxu0
    %1602 = vmatpush.bf16.msra.mxu0 %v951
    %1603 = vmatpush.bf16.msra.mxu0 %v949
    %1604 = vmatpush.bf16.msra.mxu0 %v947
    %1605 = vmatpush.bf16.msra.mxu0 %v945
    %1606 = vmatpush.bf16.msra.mxu0 %v943
    %1607 = vmatpush.bf16.msra.mxu0 %v941
    %1608 = vmatpush.bf16.msra.mxu0 %v939
    %1609 = vmatpush.bf16.msra.mxu0 %v937
    %1610 = vmatmul.bf16.gmra.mxu0 %v443
    %v1611 = vpop.f32.mrf.mxu0
    %v1612 = vadd.f32 %v1563, %v1611
    %v1613 = vpop.f32.mrf.mxu0
    %v1614 = vadd.f32 %v1565, %v1613
    %1615 = vmatmul.bf16.gmra.mxu0 %v450
    %v1616 = vpop.f32.mrf.mxu0
    %v1617 = vadd.f32 %v1568, %v1616
    %v1618 = vpop.f32.mrf.mxu0
    %v1619 = vadd.f32 %v1570, %v1618
    %1620 = vmatmul.bf16.gmra.mxu0 %v457
    %v1621 = vpop.f32.mrf.mxu0
    %v1622 = vadd.f32 %v1573, %v1621
    %v1623 = vpop.f32.mrf.mxu0
    %v1624 = vadd.f32 %v1575, %v1623
    %1625 = vmatmul.bf16.gmra.mxu0 %v464
    %v1626 = vpop.f32.mrf.mxu0
    %v1627 = vadd.f32 %v1578, %v1626
    %v1628 = vpop.f32.mrf.mxu0
    %v1629 = vadd.f32 %v1580, %v1628
    %1630 = vmatmul.bf16.gmra.mxu0 %v471
    %v1631 = vpop.f32.mrf.mxu0
    %v1632 = vadd.f32 %v1583, %v1631
    %v1633 = vpop.f32.mrf.mxu0
    %v1634 = vadd.f32 %v1585, %v1633
    %1635 = vmatmul.bf16.gmra.mxu0 %v478
    %v1636 = vpop.f32.mrf.mxu0
    %v1637 = vadd.f32 %v1588, %v1636
    %v1638 = vpop.f32.mrf.mxu0
    %v1639 = vadd.f32 %v1590, %v1638
    %1640 = vmatmul.bf16.gmra.mxu0 %v485
    %v1641 = vpop.f32.mrf.mxu0
    %v1642 = vadd.f32 %v1593, %v1641
    %v1643 = vpop.f32.mrf.mxu0
    %v1644 = vadd.f32 %v1595, %v1643
    %1645 = vmatmul.bf16.gmra.mxu0 %v492
    %v1646 = vpop.f32.mrf.mxu0
    %v1647 = vadd.f32 %v1598, %v1646
    %v1648 = vpop.f32.mrf.mxu0
    %v1649 = vadd.f32 %v1600, %v1648
    %1650 = vdwg.mxu0
    %1651 = vmatpush.bf16.msra.mxu0 %v967
    %1652 = vmatpush.bf16.msra.mxu0 %v965
    %1653 = vmatpush.bf16.msra.mxu0 %v963
    %1654 = vmatpush.bf16.msra.mxu0 %v961
    %1655 = vmatpush.bf16.msra.mxu0 %v959
    %1656 = vmatpush.bf16.msra.mxu0 %v957
    %1657 = vmatpush.bf16.msra.mxu0 %v955
    %1658 = vmatpush.bf16.msra.mxu0 %v953
    %1659 = vmatmul.bf16.gmra.mxu0 %v444
    %v1660 = vpop.f32.mrf.mxu0
    %v1661 = vadd.f32 %v1612, %v1660
    %v1662 = vpop.f32.mrf.mxu0
    %v1663 = vadd.f32 %v1614, %v1662
    %1664 = vmatmul.bf16.gmra.mxu0 %v451
    %v1665 = vpop.f32.mrf.mxu0
    %v1666 = vadd.f32 %v1617, %v1665
    %v1667 = vpop.f32.mrf.mxu0
    %v1668 = vadd.f32 %v1619, %v1667
    %1669 = vmatmul.bf16.gmra.mxu0 %v458
    %v1670 = vpop.f32.mrf.mxu0
    %v1671 = vadd.f32 %v1622, %v1670
    %v1672 = vpop.f32.mrf.mxu0
    %v1673 = vadd.f32 %v1624, %v1672
    %1674 = vmatmul.bf16.gmra.mxu0 %v465
    %v1675 = vpop.f32.mrf.mxu0
    %v1676 = vadd.f32 %v1627, %v1675
    %v1677 = vpop.f32.mrf.mxu0
    %v1678 = vadd.f32 %v1629, %v1677
    %1679 = vmatmul.bf16.gmra.mxu0 %v472
    %v1680 = vpop.f32.mrf.mxu0
    %v1681 = vadd.f32 %v1632, %v1680
    %v1682 = vpop.f32.mrf.mxu0
    %v1683 = vadd.f32 %v1634, %v1682
    %1684 = vmatmul.bf16.gmra.mxu0 %v479
    %v1685 = vpop.f32.mrf.mxu0
    %v1686 = vadd.f32 %v1637, %v1685
    %v1687 = vpop.f32.mrf.mxu0
    %v1688 = vadd.f32 %v1639, %v1687
    %1689 = vmatmul.bf16.gmra.mxu0 %v486
    %v1690 = vpop.f32.mrf.mxu0
    %v1691 = vadd.f32 %v1642, %v1690
    %v1692 = vpop.f32.mrf.mxu0
    %v1693 = vadd.f32 %v1644, %v1692
    %1694 = vmatmul.bf16.gmra.mxu0 %v493
    %v1695 = vpop.f32.mrf.mxu0
    %v1696 = vadd.f32 %v1647, %v1695
    %v1697 = vpop.f32.mrf.mxu0
    %v1698 = vadd.f32 %v1649, %v1697
    %1699 = vdwg.mxu0
    %1700 = vmatpush.bf16.msra.mxu0 %v983
    %1701 = vmatpush.bf16.msra.mxu0 %v981
    %1702 = vmatpush.bf16.msra.mxu0 %v979
    %1703 = vmatpush.bf16.msra.mxu0 %v977
    %1704 = vmatpush.bf16.msra.mxu0 %v975
    %1705 = vmatpush.bf16.msra.mxu0 %v973
    %1706 = vmatpush.bf16.msra.mxu0 %v971
    %1707 = vmatpush.bf16.msra.mxu0 %v969
    %1708 = vmatmul.bf16.gmra.mxu0 %v445
    %v1709 = vpop.f32.mrf.mxu0
    %v1710 = vadd.f32 %v1661, %v1709
    %v1711 = vpop.f32.mrf.mxu0
    %v1712 = vadd.f32 %v1663, %v1711
    %1713 = vmatmul.bf16.gmra.mxu0 %v452
    %v1714 = vpop.f32.mrf.mxu0
    %v1715 = vadd.f32 %v1666, %v1714
    %v1716 = vpop.f32.mrf.mxu0
    %v1717 = vadd.f32 %v1668, %v1716
    %1718 = vmatmul.bf16.gmra.mxu0 %v459
    %v1719 = vpop.f32.mrf.mxu0
    %v1720 = vadd.f32 %v1671, %v1719
    %v1721 = vpop.f32.mrf.mxu0
    %v1722 = vadd.f32 %v1673, %v1721
    %1723 = vmatmul.bf16.gmra.mxu0 %v466
    %v1724 = vpop.f32.mrf.mxu0
    %v1725 = vadd.f32 %v1676, %v1724
    %v1726 = vpop.f32.mrf.mxu0
    %v1727 = vadd.f32 %v1678, %v1726
    %1728 = vmatmul.bf16.gmra.mxu0 %v473
    %v1729 = vpop.f32.mrf.mxu0
    %v1730 = vadd.f32 %v1681, %v1729
    %v1731 = vpop.f32.mrf.mxu0
    %v1732 = vadd.f32 %v1683, %v1731
    %1733 = vmatmul.bf16.gmra.mxu0 %v480
    %v1734 = vpop.f32.mrf.mxu0
    %v1735 = vadd.f32 %v1686, %v1734
    %v1736 = vpop.f32.mrf.mxu0
    %v1737 = vadd.f32 %v1688, %v1736
    %1738 = vmatmul.bf16.gmra.mxu0 %v487
    %v1739 = vpop.f32.mrf.mxu0
    %v1740 = vadd.f32 %v1691, %v1739
    %v1741 = vpop.f32.mrf.mxu0
    %v1742 = vadd.f32 %v1693, %v1741
    %1743 = vmatmul.bf16.gmra.mxu0 %v494
    %v1744 = vpop.f32.mrf.mxu0
    %v1745 = vadd.f32 %v1696, %v1744
    %v1746 = vpop.f32.mrf.mxu0
    %v1747 = vadd.f32 %v1698, %v1746
    %1748 = vdwg.mxu0
    %1749 = vmatpush.bf16.msra.mxu0 %v999
    %1750 = vmatpush.bf16.msra.mxu0 %v997
    %1751 = vmatpush.bf16.msra.mxu0 %v995
    %1752 = vmatpush.bf16.msra.mxu0 %v993
    %1753 = vmatpush.bf16.msra.mxu0 %v991
    %1754 = vmatpush.bf16.msra.mxu0 %v989
    %1755 = vmatpush.bf16.msra.mxu0 %v987
    %1756 = vmatpush.bf16.msra.mxu0 %v985
    %1757 = vmatmul.bf16.gmra.mxu0 %v446
    %v1758 = vpop.f32.mrf.mxu0
    %v1759 = vadd.f32 %v1710, %v1758
    %v1760 = vpop.f32.mrf.mxu0
    %v1761 = vadd.f32 %v1712, %v1760
    %1762 = vmatmul.bf16.gmra.mxu0 %v453
    %v1763 = vpop.f32.mrf.mxu0
    %v1764 = vadd.f32 %v1715, %v1763
    %v1765 = vpop.f32.mrf.mxu0
    %v1766 = vadd.f32 %v1717, %v1765
    %1767 = vmatmul.bf16.gmra.mxu0 %v460
    %v1768 = vpop.f32.mrf.mxu0
    %v1769 = vadd.f32 %v1720, %v1768
    %v1770 = vpop.f32.mrf.mxu0
    %v1771 = vadd.f32 %v1722, %v1770
    %1772 = vmatmul.bf16.gmra.mxu0 %v467
    %v1773 = vpop.f32.mrf.mxu0
    %v1774 = vadd.f32 %v1725, %v1773
    %v1775 = vpop.f32.mrf.mxu0
    %v1776 = vadd.f32 %v1727, %v1775
    %1777 = vmatmul.bf16.gmra.mxu0 %v474
    %v1778 = vpop.f32.mrf.mxu0
    %v1779 = vadd.f32 %v1730, %v1778
    %v1780 = vpop.f32.mrf.mxu0
    %v1781 = vadd.f32 %v1732, %v1780
    %1782 = vmatmul.bf16.gmra.mxu0 %v481
    %v1783 = vpop.f32.mrf.mxu0
    %v1784 = vadd.f32 %v1735, %v1783
    %v1785 = vpop.f32.mrf.mxu0
    %v1786 = vadd.f32 %v1737, %v1785
    %1787 = vmatmul.bf16.gmra.mxu0 %v488
    %v1788 = vpop.f32.mrf.mxu0
    %v1789 = vadd.f32 %v1740, %v1788
    %v1790 = vpop.f32.mrf.mxu0
    %v1791 = vadd.f32 %v1742, %v1790
    %1792 = vmatmul.bf16.gmra.mxu0 %v495
    %v1793 = vpop.f32.mrf.mxu0
    %v1794 = vadd.f32 %v1745, %v1793
    %v1795 = vpop.f32.mrf.mxu0
    %v1796 = vadd.f32 %v1747, %v1795
    %1797 = vdwg.mxu0
    %v1798 = vmax.f32 %v1416, 0.0
    %v1799 = vmax.f32 %v1759, 0.0
    %v1800 = vmax.f32 %v1418, 0.0
    %v1801 = vmax.f32 %v1761, 0.0
    %v1802 = vmax.f32 %v1421, 0.0
    %v1803 = vmax.f32 %v1764, 0.0
    %v1804 = vmax.f32 %v1423, 0.0
    %v1805 = vmax.f32 %v1766, 0.0
    %v1806 = vmax.f32 %v1426, 0.0
    %v1807 = vmax.f32 %v1769, 0.0
    %v1808 = vmax.f32 %v1428, 0.0
    %v1809 = vmax.f32 %v1771, 0.0
    %v1810 = vmax.f32 %v1431, 0.0
    %v1811 = vmax.f32 %v1774, 0.0
    %v1812 = vmax.f32 %v1433, 0.0
    %v1813 = vmax.f32 %v1776, 0.0
    %v1814 = vmax.f32 %v1436, 0.0
    %v1815 = vmax.f32 %v1779, 0.0
    %v1816 = vmax.f32 %v1438, 0.0
    %v1817 = vmax.f32 %v1781, 0.0
    %v1818 = vmax.f32 %v1441, 0.0
    %v1819 = vmax.f32 %v1784, 0.0
    %v1820 = vmax.f32 %v1443, 0.0
    %v1821 = vmax.f32 %v1786, 0.0
    %v1822 = vmax.f32 %v1446, 0.0
    %v1823 = vmax.f32 %v1789, 0.0
    %v1824 = vmax.f32 %v1448, 0.0
    %v1825 = vmax.f32 %v1791, 0.0
    %v1826 = vmax.f32 %v1451, 0.0
    %v1827 = vmax.f32 %v1794, 0.0
    %v1828 = vmax.f32 %v1453, 0.0
    %v1829 = vmax.f32 %v1796, 0.0
    %v1830 = vpack.c.bf16 %v1800, %v1798
    %v1831 = vpack.c.bf16 %v1801, %v1799
    %v1832 = vpack.c.bf16 %v1804, %v1802
    %v1833 = vpack.c.bf16 %v1805, %v1803
    %v1834 = vpack.c.bf16 %v1808, %v1806
    %v1835 = vpack.c.bf16 %v1809, %v1807
    %v1836 = vpack.c.bf16 %v1812, %v1810
    %v1837 = vpack.c.bf16 %v1813, %v1811
    %v1838 = vpack.c.bf16 %v1816, %v1814
    %v1839 = vpack.c.bf16 %v1817, %v1815
    %v1840 = vpack.c.bf16 %v1820, %v1818
    %v1841 = vpack.c.bf16 %v1821, %v1819
    %v1842 = vpack.c.bf16 %v1824, %v1822
    %v1843 = vpack.c.bf16 %v1825, %v1823
    %v1844 = vpack.c.bf16 %v1828, %v1826
    %v1845 = vpack.c.bf16 %v1829, %v1827
    %v1846 = vld [vmem:[#allocation8] sm:$0xf]
    %v1847 = vld [vmem:[#allocation8 + $0x4] sm:$0xf]
    %v1848 = vld [vmem:[#allocation8 + $0x8] sm:$0xf]
    %v1849 = vld [vmem:[#allocation8 + $0xc] sm:$0xf]
    %v1850 = vld [vmem:[#allocation8 + $0x10] sm:$0xf]
    %v1851 = vld [vmem:[#allocation8 + $0x14] sm:$0xf]
    %v1852 = vld [vmem:[#allocation8 + $0x18] sm:$0xf]
    %v1853 = vld [vmem:[#allocation8 + $0x1c] sm:$0xf]
    %v1854 = vld [vmem:[#allocation8 + $0x20] sm:$0xf]
    %v1855 = vld [vmem:[#allocation8 + $0x24] sm:$0xf]
    %v1856 = vld [vmem:[#allocation8 + $0x28] sm:$0xf]
    %v1857 = vld [vmem:[#allocation8 + $0x2c] sm:$0xf]
    %v1858 = vld [vmem:[#allocation8 + $0x30] sm:$0xf]
    %v1859 = vld [vmem:[#allocation8 + $0x34] sm:$0xf]
    %v1860 = vld [vmem:[#allocation8 + $0x38] sm:$0xf]
    %v1861 = vld [vmem:[#allocation8 + $0x3c] sm:$0xf]
    %v1862 = vld [vmem:[#allocation8 + $0x40] sm:$0xf]
    %v1863 = vld [vmem:[#allocation8 + $0x44] sm:$0xf]
    %v1864 = vld [vmem:[#allocation8 + $0x48] sm:$0xf]
    %v1865 = vld [vmem:[#allocation8 + $0x4c] sm:$0xf]
    %v1866 = vld [vmem:[#allocation8 + $0x50] sm:$0xf]
    %v1867 = vld [vmem:[#allocation8 + $0x54] sm:$0xf]
    %v1868 = vld [vmem:[#allocation8 + $0x58] sm:$0xf]
    %v1869 = vld [vmem:[#allocation8 + $0x5c] sm:$0xf]
    %v1870 = vld [vmem:[#allocation8 + $0x60] sm:$0xf]
    %v1871 = vld [vmem:[#allocation8 + $0x64] sm:$0xf]
    %v1872 = vld [vmem:[#allocation8 + $0x68] sm:$0xf]
    %v1873 = vld [vmem:[#allocation8 + $0x6c] sm:$0xf]
    %v1874 = vld [vmem:[#allocation8 + $0x70] sm:$0xf]
    %v1875 = vld [vmem:[#allocation8 + $0x74] sm:$0xf]
    %v1876 = vld [vmem:[#allocation8 + $0x78] sm:$0xf]
    %v1877 = vld [vmem:[#allocation8 + $0x7c] sm:$0xf]
    %v1878 = vld [vmem:[%s4] sm:$0x1]
    %v1880 = vperm.slane %v1878, 0
    %v1914 = vunpack.c.l.b16 %v1846
    %v1915 = vunpack.c.l.b16 %v1847
    %v1916 = vunpack.c.l.b16 %v1848
    %v1917 = vunpack.c.l.b16 %v1849
    %v1918 = vunpack.c.l.b16 %v1850
    %v1919 = vunpack.c.l.b16 %v1851
    %v1920 = vunpack.c.l.b16 %v1852
    %v1921 = vunpack.c.l.b16 %v1853
    %v1922 = vunpack.c.l.b16 %v1854
    %v1923 = vunpack.c.l.b16 %v1855
    %v1924 = vunpack.c.l.b16 %v1856
    %v1925 = vunpack.c.l.b16 %v1857
    %v1926 = vunpack.c.l.b16 %v1858
    %v1927 = vunpack.c.l.b16 %v1859
    %v1928 = vunpack.c.l.b16 %v1860
    %v1929 = vunpack.c.l.b16 %v1861
    %v1930 = vunpack.c.l.b16 %v1862
    %v1931 = vunpack.c.l.b16 %v1863
    %v1932 = vunpack.c.l.b16 %v1864
    %v1933 = vunpack.c.l.b16 %v1865
    %v1934 = vunpack.c.l.b16 %v1866
    %v1935 = vunpack.c.l.b16 %v1867
    %v1936 = vunpack.c.l.b16 %v1868
    %v1937 = vunpack.c.l.b16 %v1869
    %v1938 = vunpack.c.l.b16 %v1870
    %v1939 = vunpack.c.l.b16 %v1871
    %v1940 = vunpack.c.l.b16 %v1872
    %v1941 = vunpack.c.l.b16 %v1873
    %v1942 = vunpack.c.l.b16 %v1874
    %v1943 = vunpack.c.l.b16 %v1875
    %v1944 = vunpack.c.l.b16 %v1876
    %v1945 = vunpack.c.l.b16 %v1877
    %v1946 = vpack.c.b16 %v1915, %v1914
    %v1947 = vpack.c.b16 %v1917, %v1916
    %v1948 = vpack.c.b16 %v1919, %v1918
    %v1949 = vpack.c.b16 %v1921, %v1920
    %v1950 = vpack.c.b16 %v1923, %v1922
    %v1951 = vpack.c.b16 %v1925, %v1924
    %v1952 = vpack.c.b16 %v1927, %v1926
    %v1953 = vpack.c.b16 %v1929, %v1928
    %v1954 = vpack.c.b16 %v1931, %v1930
    %v1955 = vpack.c.b16 %v1933, %v1932
    %v1956 = vpack.c.b16 %v1935, %v1934
    %v1957 = vpack.c.b16 %v1937, %v1936
    %v1958 = vpack.c.b16 %v1939, %v1938
    %v1959 = vpack.c.b16 %v1941, %v1940
    %v1960 = vpack.c.b16 %v1943, %v1942
    %v1961 = vpack.c.b16 %v1945, %v1944
    %1978 = vmatpush.bf16.msra.mxu0 %v1953
    %1979 = vmatpush.bf16.msra.mxu0 %v1952
    %1980 = vmatpush.bf16.msra.mxu0 %v1951
    %1981 = vmatpush.bf16.msra.mxu0 %v1950
    %1982 = vmatpush.bf16.msra.mxu0 %v1949
    %1983 = vmatpush.bf16.msra.mxu0 %v1948
    %1984 = vmatpush.bf16.msra.mxu0 %v1947
    %1985 = vmatpush.bf16.msra.mxu0 %v1946
    %1986 = vmatmul.bf16.gmra.mxu0 %v1830
    %v1987 = vpop.f32.mrf.mxu0
    %v1988 = vadd.f32 %v1880, %v1987
    %v1989 = vpop.f32.mrf.mxu0
    %v1990 = vadd.f32 %v1880, %v1989
    %1991 = vmatmul.bf16.gmra.mxu0 %v1832
    %v1992 = vpop.f32.mrf.mxu0
    %v1993 = vadd.f32 %v1880, %v1992
    %v1994 = vpop.f32.mrf.mxu0
    %v1995 = vadd.f32 %v1880, %v1994
    %1996 = vmatmul.bf16.gmra.mxu0 %v1834
    %v1997 = vpop.f32.mrf.mxu0
    %v1998 = vadd.f32 %v1880, %v1997
    %v1999 = vpop.f32.mrf.mxu0
    %v2000 = vadd.f32 %v1880, %v1999
    %2001 = vmatmul.bf16.gmra.mxu0 %v1836
    %v2002 = vpop.f32.mrf.mxu0
    %v2003 = vadd.f32 %v1880, %v2002
    %v2004 = vpop.f32.mrf.mxu0
    %v2005 = vadd.f32 %v1880, %v2004
    %2006 = vmatmul.bf16.gmra.mxu0 %v1838
    %v2007 = vpop.f32.mrf.mxu0
    %v2008 = vadd.f32 %v1880, %v2007
    %v2009 = vpop.f32.mrf.mxu0
    %v2010 = vadd.f32 %v1880, %v2009
    %2011 = vmatmul.bf16.gmra.mxu0 %v1840
    %v2012 = vpop.f32.mrf.mxu0
    %v2013 = vadd.f32 %v1880, %v2012
    %v2014 = vpop.f32.mrf.mxu0
    %v2015 = vadd.f32 %v1880, %v2014
    %2016 = vmatmul.bf16.gmra.mxu0 %v1842
    %v2017 = vpop.f32.mrf.mxu0
    %v2018 = vadd.f32 %v1880, %v2017
    %v2019 = vpop.f32.mrf.mxu0
    %v2020 = vadd.f32 %v1880, %v2019
    %2021 = vmatmul.bf16.gmra.mxu0 %v1844
    %v2022 = vpop.f32.mrf.mxu0
    %v2023 = vadd.f32 %v1880, %v2022
    %v2024 = vpop.f32.mrf.mxu0
    %v2025 = vadd.f32 %v1880, %v2024
    %2026 = vdwg.mxu0
    %2027 = vmatpush.bf16.msra.mxu0 %v1961
    %2028 = vmatpush.bf16.msra.mxu0 %v1960
    %2029 = vmatpush.bf16.msra.mxu0 %v1959
    %2030 = vmatpush.bf16.msra.mxu0 %v1958
    %2031 = vmatpush.bf16.msra.mxu0 %v1957
    %2032 = vmatpush.bf16.msra.mxu0 %v1956
    %2033 = vmatpush.bf16.msra.mxu0 %v1955
    %2034 = vmatpush.bf16.msra.mxu0 %v1954
    %2035 = vmatmul.bf16.gmra.mxu0 %v1831
    %v2036 = vpop.f32.mrf.mxu0
    %v2037 = vadd.f32 %v1988, %v2036
    %v2038 = vpop.f32.mrf.mxu0
    %v2039 = vadd.f32 %v1990, %v2038
    %2040 = vmatmul.bf16.gmra.mxu0 %v1833
    %v2041 = vpop.f32.mrf.mxu0
    %v2042 = vadd.f32 %v1993, %v2041
    %v2043 = vpop.f32.mrf.mxu0
    %v2044 = vadd.f32 %v1995, %v2043
    %2045 = vmatmul.bf16.gmra.mxu0 %v1835
    %v2046 = vpop.f32.mrf.mxu0
    %v2047 = vadd.f32 %v1998, %v2046
    %v2048 = vpop.f32.mrf.mxu0
    %v2049 = vadd.f32 %v2000, %v2048
    %2050 = vmatmul.bf16.gmra.mxu0 %v1837
    %v2051 = vpop.f32.mrf.mxu0
    %v2052 = vadd.f32 %v2003, %v2051
    %v2053 = vpop.f32.mrf.mxu0
    %v2054 = vadd.f32 %v2005, %v2053
    %2055 = vmatmul.bf16.gmra.mxu0 %v1839
    %v2056 = vpop.f32.mrf.mxu0
    %v2057 = vadd.f32 %v2008, %v2056
    %v2058 = vpop.f32.mrf.mxu0
    %v2059 = vadd.f32 %v2010, %v2058
    %2060 = vmatmul.bf16.gmra.mxu0 %v1841
    %v2061 = vpop.f32.mrf.mxu0
    %v2062 = vadd.f32 %v2013, %v2061
    %v2063 = vpop.f32.mrf.mxu0
    %v2064 = vadd.f32 %v2015, %v2063
    %2065 = vmatmul.bf16.gmra.mxu0 %v1843
    %v2066 = vpop.f32.mrf.mxu0
    %v2067 = vadd.f32 %v2018, %v2066
    %v2068 = vpop.f32.mrf.mxu0
    %v2069 = vadd.f32 %v2020, %v2068
    %2070 = vmatmul.bf16.gmra.mxu0 %v1845
    %v2071 = vpop.f32.mrf.mxu0
    %v2072 = vadd.f32 %v2023, %v2071
    %v2073 = vpop.f32.mrf.mxu0
    %v2074 = vadd.f32 %v2025, %v2073
    %2075 = vdwg.mxu0
    %2076 = vst [vmem:[#allocation10] sm:$0xff] %v2037
    %2077 = vst [vmem:[#allocation10 + $0x8] sm:$0xff] %v2039
    %2078 = vst [vmem:[#allocation10 + $0x10] sm:$0xff] %v2042
    %2079 = vst [vmem:[#allocation10 + $0x18] sm:$0xff] %v2044
    %2080 = vst [vmem:[#allocation10 + $0x20] sm:$0xff] %v2047
    %2081 = vst [vmem:[#allocation10 + $0x28] sm:$0xff] %v2049
    %2082 = vst [vmem:[#allocation10 + $0x30] sm:$0xff] %v2052
    %2083 = vst [vmem:[#allocation10 + $0x38] sm:$0xff] %v2054
    %2084 = vst [vmem:[#allocation10 + $0x40] sm:$0xff] %v2057
    %2085 = vst [vmem:[#allocation10 + $0x48] sm:$0xff] %v2059
    %2086 = vst [vmem:[#allocation10 + $0x50] sm:$0xff] %v2062
    %2087 = vst [vmem:[#allocation10 + $0x58] sm:$0xff] %v2064
    %2088 = vst [vmem:[#allocation10 + $0x60] sm:$0xff] %v2067
    %2089 = vst [vmem:[#allocation10 + $0x68] sm:$0xff] %v2069
    %2090 = vst [vmem:[#allocation10 + $0x70] sm:$0xff] %v2072
    %2091 = vst [vmem:[#allocation10 + $0x78] sm:$0xff] %v2074
    // Predicated region
    $region38: #{tpu_custom_call.1} parent=1 // pred_check
      _
    $region39: #{tpu_custom_call.1} parent=1 // pred_check_branch
      %2093 = sbr.rel (0) target = $region41
    $region40: #{tpu_custom_call.1} parent=1 // pred_region
      %2095 = vsyncadd [#allocation4], 0
      %s2096 = sshll.u32 [#allocation10], 4
      %s2097 = int_to_ptr.vmem [resolvable:$true] %s2096
      %s2098 = sshll.u32 %s5, 4
      %s2099 = int_to_ptr.hbm [resolvable:$true] %s2098
      %2104 = dma.vmem_to_hbm [thread:$0]  %s2097, 2048, %s2099, [#allocation4], 128, 128, 8
    $region41: #{tpu_custom_call.1} parent=1 // pred_fallthru
      _
    // Predicated region
    $region42: #{tpu_custom_call.1} parent=1 // pred_check
      _
    $region43: #{tpu_custom_call.1} parent=1 // pred_check_branch
      %2106 = sbr.rel (0) target = $region45
    $region44: #{tpu_custom_call.1} parent=1 // pred_region
      %2108 = dma.done [#allocation4], 2048
    $region45: #{tpu_custom_call.1} parent=1 // pred_fallthru
      _
    %2109 = vsyncpa [#allocation3], 1
    %2110 = vsyncpa [#allocation6], 1
    %2111 = vsyncpa [#allocation9], 1
    %2112 = vsyncpa [#allocation4], 1

</llo_original>
